<compile_context>
chip_gen: v7x
topology: tpu7x:2x2x1
jax: 0.10.0
libtpu: 0.0.40
codegen_flags: <defaults>
</compile_context>

<pallas_src>
import functools

import jax
import jax.numpy as jnp
from jax.experimental import pallas as pl
from jax.experimental.pallas import tpu as pltpu


def _round_up(x, m):
    return ((x + m - 1) // m) * m


def _largest_divisor_leq(n, cap):
    best = 1
    for d in range(1, n + 1):
        if n % d == 0 and d <= cap:
            best = d
    return best


def _clamp_vmem(raw_bytes):
    # Real footprint + margin, capped at 48 MiB (v7x physical VMEM is 64 MiB/TC).
    return int(min(48 * 1024 * 1024,
                   max(32 * 1024 * 1024, int(raw_bytes * 1.5) + (4 << 20))))


def _weight_spec(shape, index_map, deep_buffer):
    """BlockSpec for a streamed weight tile; triple-buffered when supported."""
    if deep_buffer and hasattr(pl, "Buffered"):
        try:
            return pl.BlockSpec(shape, index_map, pipeline_mode=pl.Buffered(3))
        except TypeError:
            pass
    return pl.BlockSpec(shape, index_map)


# ---------------------------------------------------------------------------
# Pallas kernel 1: tiled  out = relu?(x @ w + b), bf16 MXU operands, f32 accum
# (used by conv1's im2col matmul and by all Linear layers)
# ---------------------------------------------------------------------------
def _matmul_bias_kernel(x_ref, w_ref, b_ref, o_ref, acc_ref, *, relu):
    k = pl.program_id(2)

    @pl.when(k == 0)
    def _():
        acc_ref[...] = jnp.zeros_like(acc_ref)

    acc_ref[...] += jnp.dot(x_ref[...], w_ref[...],
                            preferred_element_type=jnp.float32)

    @pl.when(k == pl.num_programs(2) - 1)
    def _():
        r = acc_ref[...] + b_ref[...]
        if relu:
            r = jnp.maximum(r, 0.0)
        o_ref[...] = r.astype(o_ref.dtype)


def pallas_linear(x, w_p, b_p, *, relu, out_dtype=jnp.bfloat16, fc_path=False):
    """y = act(x @ w_p + b_p); returns the full (M, Np) result (no slicing).

    x:   (M, K) activations (cast to bf16 here).  K must equal w_p.shape[0].
    w_p: (K, Np) bf16 weight (FC weights pre-padded to 128-multiples at init).
    b_p: (1, Np) f32 bias.
    """
    x = x.astype(jnp.bfloat16)
    M, K = x.shape
    Kp, Np = w_p.shape
    assert K == Kp, (K, Kp)

    if fc_path:
        # Tiny M, huge weights -> pure weight-streaming: big K/N tiles; keep
        # >=2 blocks on the parallel N axis so both v7x TensorCores get work.
        tm = min(128, _round_up(M, 8))
        ku, nu = Kp // 128, Np // 128
        max_nu = 8
        if nu >= 2:
            max_nu = min(max_nu, max(1, nu // 2))
        tk = 128 * _largest_divisor_leq(ku, 20)       # <= 2560
        tn = 128 * _largest_divisor_leq(nu, max_nu)   # <= 1024
    else:
        # conv1 im2col matmul: K, N small -> single full-extent K/N block;
        # tile only M and keep >=2 blocks on the parallel M axis when possible.
        tk, tn = Kp, Np
        tm = max(8, min(512, _round_up((M + 1) // 2, 8)))

    grid = (pl.cdiv(M, tm), Np // tn, Kp // tk)

    w_bufs = 3 if fc_path else 2
    est = (2 * tm * tk * 2 + w_bufs * tk * tn * 2 + 2 * tn * 4
           + 2 * tm * tn * jnp.dtype(out_dtype).itemsize + tm * tn * 4)

    return pl.pallas_call(
        functools.partial(_matmul_bias_kernel, relu=relu),
        out_shape=jax.ShapeDtypeStruct((M, Np), out_dtype),
        grid_spec=pltpu.PrefetchScalarGridSpec(
            num_scalar_prefetch=0,
            grid=grid,
            in_specs=[
                pl.BlockSpec((tm, tk), lambda i, j, k: (i, k)),
                _weight_spec((tk, tn), lambda i, j, k: (k, j), fc_path),
                pl.BlockSpec((1, tn), lambda i, j, k: (0, j)),
            ],
            out_specs=pl.BlockSpec((tm, tn), lambda i, j, k: (i, j)),
            scratch_shapes=[pltpu.VMEM((tm, tn), jnp.float32)],
        ),
        compiler_params=pltpu.CompilerParams(
            dimension_semantics=("parallel", "parallel", "arbitrary"),
            vmem_limit_bytes=_clamp_vmem(est),
        ),
    )(x, w_p, b_p)


# ---------------------------------------------------------------------------
# Pallas kernel 2: direct stride-1 conv + bias + ReLU (shifted flat-matmul)
# ---------------------------------------------------------------------------
def _conv_direct_kernel(x_ref, w_ref, b_ref, o_ref, acc_ref, *,
                        ksize, Wp, OH, OW, Cin):
    """One image per grid step.  x_ref: (1, Hp*Wp, Cin) flattened padded image."""
    M = OH * Wp
    acc_ref[...] = jnp.zeros_like(acc_ref)
    for kh in range(ksize):
        for kw in range(ksize):
            shift = kh * Wp + kw                                   # static
            xs = x_ref[0, pl.ds(shift, M), :]                      # (M, Cin)
            ws = w_ref[pl.ds((kh * ksize + kw) * Cin, Cin), :]     # (Cin, Cout)
            acc_ref[...] += jnp.dot(xs, ws,
                                    preferred_element_type=jnp.float32)
    bias = b_ref[...]                                              # (1, Cout)
    # Drop the (K-1) junk columns at the right edge of every padded-width row.
    for oh in range(OH):
        row = acc_ref[pl.ds(oh * Wp, OW), :] + bias
        o_ref[0, oh, :, :] = jnp.maximum(row, 0.0).astype(o_ref.dtype)


def conv2d_relu_direct(x, w_p, b_p, cout, ksize, padding):
    """Direct stride-1 conv + bias + ReLU on NHWC bf16 input (no im2col)."""
    x = x.astype(jnp.bfloat16)
    N, H, W, Cin = x.shape
    OH = H + 2 * padding - ksize + 1
    OW = W + 2 * padding - ksize + 1
    Wp = W + 2 * padding
    Hp = H + 2 * padding + 1       # +1 row so the largest tap shift stays in-bounds
    # TODO(synk): the spatial zero-pad is one small extra XLA pass over the raw
    # activation; XLA normally fuses it with the producing pool/conv epilogue.
    x_pad = jnp.pad(x, ((0, 0), (padding, padding + 1), (padding, padding), (0, 0)))
    x_flat = x_pad.reshape(N, Hp * Wp, Cin)

    cin_l = _round_up(Cin, 128)
    cout_l = _round_up(cout, 128)
    est = (2 * Hp * Wp * cin_l * 2 + 2 * ksize * ksize * Cin * cout_l * 2
           + 2 * OH * OW * cout_l * 2 + OH * Wp * cout_l * 4)

    return pl.pallas_call(
        functools.partial(_conv_direct_kernel, ksize=ksize, Wp=Wp, OH=OH, OW=OW,
                          Cin=Cin),
        out_shape=jax.ShapeDtypeStruct((N, OH, OW, cout), jnp.bfloat16),
        grid_spec=pltpu.PrefetchScalarGridSpec(
            num_scalar_prefetch=0,
            grid=(N,),
            in_specs=[
                pl.BlockSpec((1, Hp * Wp, Cin), lambda n: (n, 0, 0)),
                pl.BlockSpec((ksize * ksize * Cin, cout), lambda n: (0, 0)),
                pl.BlockSpec((1, cout), lambda n: (0, 0)),
            ],
            out_specs=pl.BlockSpec((1, OH, OW, cout), lambda n: (n, 0, 0, 0)),
            scratch_shapes=[pltpu.VMEM((OH * Wp, cout), jnp.float32)],
        ),
        compiler_params=pltpu.CompilerParams(
            dimension_semantics=("parallel",),
            vmem_limit_bytes=_clamp_vmem(est),
        ),
    )(x_flat, w_p, b_p)


# ---------------------------------------------------------------------------
# conv1 (stride 4, Cin=3): im2col + Pallas matmul; pooling = XLA layout glue
# ---------------------------------------------------------------------------
def conv2d_relu_im2col(x, w_p, b_p, cout, ksize, stride, padding):
    x = x.astype(jnp.bfloat16)
    N = x.shape[0]
    patches = jax.lax.conv_general_dilated_patches(
        x, filter_shape=(ksize, ksize), window_strides=(stride, stride),
        padding=((padding, padding), (padding, padding)),
        dimension_numbers=("NHWC", "HWIO", "NHWC"))
    _, OH, OW, K = patches.shape
    y = pallas_linear(patches.reshape(N * OH * OW, K), w_p, b_p, relu=True)
    return y.reshape(N, OH, OW, cout)


def maxpool_3x3_s2(x):
    return jax.lax.reduce_window(x, -jnp.inf, jax.lax.max,
                                 (1, 3, 3, 1), (1, 2, 2, 1), "VALID")


def adaptive_avg_pool(x, out_hw=6):
    """PyTorch AdaptiveAvgPool2d((6,6)) semantics on NHWC input."""
    N, H, W, C = x.shape
    if H == out_hw and W == out_hw:
        return x
    if H % out_hw == 0 and W % out_hw == 0:
        xr = x.reshape(N, out_hw, H // out_hw, out_hw, W // out_hw, C)
        return jnp.mean(xr, axis=(2, 4), dtype=jnp.float32).astype(x.dtype)
    rows = []
    for oh in range(out_hw):
        h0 = (oh * H) // out_hw
        h1 = -((-(oh + 1) * H) // out_hw)
        cells = []
        for ow in range(out_hw):
            w0 = (ow * W) // out_hw
            w1 = -((-(ow + 1) * W) // out_hw)
            cells.append(jnp.mean(x[:, h0:h1, w0:w1, :], axis=(1, 2),
                                  dtype=jnp.float32))
        rows.append(jnp.stack(cells, axis=1))
    return jnp.stack(rows, axis=1).astype(x.dtype)


# ---------------------------------------------------------------------------
# Deterministic synthetic parameters (shapes mirror torchvision alexnet),
# pre-packed / cast to bf16 ONCE at init (outside the jitted forward).
# ---------------------------------------------------------------------------
_CONV_CFG = [
    # (Cin, Cout, K, stride, pad)
    (3, 64, 11, 4, 2),
    (64, 192, 5, 1, 2),
    (192, 384, 3, 1, 1),
    (384, 256, 3, 1, 1),
    (256, 256, 3, 1, 1),
]
_FC_CFG = [(9216, 4096), (4096, 4096), (4096, 1000)]


def _pack_fc(w, b):
    """Pad (K,N) weight / (N,) bias to 128 multiples; weight bf16, bias (1,Np) f32."""
    K, N = w.shape
    Kp, Np = _round_up(K, 128), _round_up(N, 128)
    w_p = jnp.pad(w, ((0, Kp - K), (0, Np - N))).astype(jnp.bfloat16)
    b_p = jnp.pad(b, (0, Np - N)).astype(jnp.float32).reshape(1, Np)
    return w_p, b_p


def _pack_conv_im2col(w_hwio, b):
    """Match conv_general_dilated_patches channel order: (Cin, KH, KW) major->minor."""
    kh, kw, cin, cout = w_hwio.shape
    w_p = jnp.transpose(w_hwio, (2, 0, 1, 3)).reshape(cin * kh * kw, cout)
    return w_p.astype(jnp.bfloat16), b.astype(jnp.float32).reshape(1, cout)


def _pack_conv_direct(w_hwio, b):
    """(KH, KW, Cin) major->minor flatten for the shifted flat-matmul kernel."""
    kh, kw, cin, cout = w_hwio.shape
    w_p = w_hwio.reshape(kh * kw * cin, cout)
    return w_p.astype(jnp.bfloat16), b.astype(jnp.float32).reshape(1, cout)


def init_params(key, out_features):
    params = {}
    keys = jax.random.split(key, len(_CONV_CFG) + len(_FC_CFG) + 1)
    for i, (cin, cout, k, _, _) in enumerate(_CONV_CFG):
        fan_in = k * k * cin
        w = (jax.random.normal(keys[i], (k, k, cin, cout), jnp.float32)
             / jnp.sqrt(fan_in))
        b = jnp.full((cout,), 0.01, jnp.float32)
        pack = _pack_conv_im2col if i == 0 else _pack_conv_direct
        params[f"c{i+1}_w"], params[f"c{i+1}_b"] = pack(w, b)
    fc_dims = _FC_CFG + [(1000, out_features)]
    for j, (din, dout) in enumerate(fc_dims):
        kk = keys[len(_CONV_CFG) + j]
        w = jax.random.normal(kk, (din, dout), jnp.float32) / jnp.sqrt(din)
        b = jnp.full((dout,), 0.01, jnp.float32)
        params[f"fc{j+1}_w"], params[f"fc{j+1}_b"] = _pack_fc(w, b)
    return params


# ---------------------------------------------------------------------------
# Forward pass (matches AlexNet.forward: features + avgpool, flatten, regression)
# ---------------------------------------------------------------------------
def alexnet_forward(params, x_nchw, out_features):
    x = jnp.transpose(x_nchw, (0, 2, 3, 1)).astype(jnp.bfloat16)   # NCHW -> NHWC

    # --- features (torchvision alexnet .features + AdaptiveAvgPool2d((6,6))) ---
    x = conv2d_relu_im2col(x, params["c1_w"], params["c1_b"], 64, 11,
                           stride=4, padding=2)
    x = maxpool_3x3_s2(x)
    x = conv2d_relu_direct(x, params["c2_w"], params["c2_b"], 192, 5, padding=2)
    x = maxpool_3x3_s2(x)
    x = conv2d_relu_direct(x, params["c3_w"], params["c3_b"], 384, 3, padding=1)
    x = conv2d_relu_direct(x, params["c4_w"], params["c4_b"], 256, 3, padding=1)
    x = conv2d_relu_direct(x, params["c5_w"], params["c5_b"], 256, 3, padding=1)
    x = maxpool_3x3_s2(x)
    x = adaptive_avg_pool(x, 6)                                    # (N, 6, 6, 256)

    # Flatten in PyTorch's NCHW order (y.view(N, -1) on (N, 256, 6, 6)).
    y = jnp.transpose(x, (0, 3, 1, 2)).reshape(x.shape[0], -1)     # (N, 9216)

    # --- regression head (nn.Dropout == identity at inference) ----------------
    # Keep M padded and K/N at their 128-padded widths through the whole chain;
    # padded weight rows/cols are zero so results are exact; slice once at the end.
    M = y.shape[0]
    Mp = _round_up(M, 8)
    y = y.astype(jnp.bfloat16)
    if Mp != M:
        y = jnp.pad(y, ((0, Mp - M), (0, 0)))
    y = pallas_linear(y, params["fc1_w"], params["fc1_b"], relu=True, fc_path=True)
    y = pallas_linear(y, params["fc2_w"], params["fc2_b"], relu=True, fc_path=True)
    y = pallas_linear(y, params["fc3_w"], params["fc3_b"], relu=True, fc_path=True)
    y = pallas_linear(y, params["fc4_w"], params["fc4_b"], relu=False,
                      out_dtype=jnp.float32, fc_path=True)
    return y[:M, :out_features]


def _conv_reference(x, w_hwio, b, stride, padding):
    y = jax.lax.conv_general_dilated(
        x.astype(jnp.float32), w_hwio.astype(jnp.float32),
        window_strides=(stride, stride),
        padding=((padding, padding), (padding, padding)),
        dimension_numbers=("NHWC", "HWIO", "NHWC"))
    return jnp.maximum(y + b, 0.0)


if __name__ == "__main__":
    key = jax.random.PRNGKey(0)
    k_param, k_x, k_chk = jax.random.split(key, 3)

    OUT_FEATURES = 10
    params = init_params(k_param, OUT_FEATURES)

    # --- tiny numerical self-checks of both conv paths (loose bf16 tolerance) --
    kc = jax.random.split(k_chk, 4)
    xs = jax.random.normal(kc[0], (1, 9, 9, 64), jnp.float32)
    ws = jax.random.normal(kc[1], (3, 3, 64, 128), jnp.float32) / jnp.sqrt(3 * 3 * 64)
    bs = jnp.full((128,), 0.05, jnp.float32)
    wp, bp = _pack_conv_direct(ws, bs)
    got = conv2d_relu_direct(xs, wp, bp, 128, 3, padding=1).astype(jnp.float32)
    want = _conv_reference(xs, ws, bs, 1, 1)
    assert float(jnp.max(jnp.abs(got - want))) < 0.15, "direct conv mismatch"

    xs1 = jax.random.normal(kc[2], (1, 24, 24, 3), jnp.float32)
    ws1 = jax.random.normal(kc[3], (11, 11, 3, 64), jnp.float32) / jnp.sqrt(11 * 11 * 3)
    bs1 = jnp.full((64,), 0.05, jnp.float32)
    wp1, bp1 = _pack_conv_im2col(ws1, bs1)
    got1 = conv2d_relu_im2col(xs1, wp1, bp1, 64, 11,
                              stride=4, padding=2).astype(jnp.float32)
    want1 = _conv_reference(xs1, ws1, bs1, 4, 2)
    assert float(jnp.max(jnp.abs(got1 - want1))) < 0.15, "im2col conv mismatch"

    # --- full forward ----------------------------------------------------------
    # Channels must be 3 (first conv); adaptive pooling guarantees the 9216-wide
    # flatten regardless of spatial size.
    x = jax.random.normal(k_x, (2, 3, 64, 64), jnp.float32)
    fwd = jax.jit(alexnet_forward, static_argnums=2)
    out = fwd(params, x, OUT_FEATURES)
    out = jax.block_until_ready(out)

    assert out.shape == (2, OUT_FEATURES), out.shape
    assert bool(jnp.all(jnp.isfinite(out)))
    print("KERNEL_OK")
</pallas_src>

<mosaic_0001>
module attributes {stable_mosaic.version = 11 : i64} {
  func.func @_conv_direct_kernel(%arg0: i32, %arg1: memref<1x132x64xbf16, #tpu.memory_space<vmem>>, %arg2: memref<576x128xbf16, #tpu.memory_space<vmem>>, %arg3: memref<1x128xf32, #tpu.memory_space<vmem>>, %arg4: memref<1x9x9x128xbf16, #tpu.memory_space<vmem>>, %arg5: memref<99x128xf32, #tpu.memory_space<vmem>>) attributes {dimension_semantics = [#tpu.dimension_semantics<parallel>], iteration_bounds = array<i64: 1>, scalar_prefetch = 0 : i64, scratch_operands = 1 : i64, tpu.core_type = #tpu.core_type<tc>, window_params = [{transform_indices = @transform_0, window_bounds = array<i64: 1, 132, 64>}, {pipeline_mode = #tpu.pipeline_mode<synchronous>, transform_indices = @transform_1, window_bounds = array<i64: 576, 128>}, {pipeline_mode = #tpu.pipeline_mode<synchronous>, transform_indices = @transform_2, window_bounds = array<i64: 1, 128>}, {transform_indices = @transform_3, window_bounds = array<i64: 1, 9, 9, 128>}]} {
    %cst = arith.constant 0.000000e+00 : f32
    %0 = vector.broadcast %cst : f32 to vector<99x128xf32>
    %c0 = arith.constant 0 : index
    %c0_0 = arith.constant 0 : index
    %1 = vector.load %arg5[%c0, %c0_0] : memref<99x128xf32, #tpu.memory_space<vmem>>, vector<99x128xf32>
    tpu.vector_store %arg5[%c0, %c0_0], %0 {strides = array<i32>} : memref<99x128xf32, #tpu.memory_space<vmem>>, vector<99x128xf32>,
    %c0_1 = arith.constant 0 : index
    %c0_2 = arith.constant 0 : index
    %c0_3 = arith.constant 0 : index
    %2 = vector.load %arg1[%c0_1, %c0_2, %c0_3] : memref<1x132x64xbf16, #tpu.memory_space<vmem>>, vector<1x99x64xbf16>
    %3 = vector.shape_cast %2 : vector<1x99x64xbf16> to vector<99x64xbf16>
    %c0_4 = arith.constant 0 : index
    %c0_5 = arith.constant 0 : index
    %4 = vector.load %arg2[%c0_4, %c0_5] : memref<576x128xbf16, #tpu.memory_space<vmem>>, vector<64x128xbf16>
    %c0_6 = arith.constant 0 : index
    %c0_7 = arith.constant 0 : index
    %5 = vector.load %arg5[%c0_6, %c0_7] : memref<99x128xf32, #tpu.memory_space<vmem>>, vector<99x128xf32>
    %cst_8 = arith.constant dense<0.000000e+00> : vector<99x128xf32>
    %6 = tpu.matmul %3, %4, %cst_8 {dimension_numbers = #tpu.dot_dimension_numbers<[1], [0], [0], [1], [0, 0, 1, 1], [], []>} : vector<99x64xbf16>, vector<64x128xbf16>, vector<99x128xf32> -> vector<99x128xf32>
    %7 = arith.addf %5, %6 : vector<99x128xf32>
    %c0_9 = arith.constant 0 : index
    %c0_10 = arith.constant 0 : index
    %8 = vector.load %arg5[%c0_9, %c0_10] : memref<99x128xf32, #tpu.memory_space<vmem>>, vector<99x128xf32>
    tpu.vector_store %arg5[%c0_9, %c0_10], %7 {strides = array<i32>} : memref<99x128xf32, #tpu.memory_space<vmem>>, vector<99x128xf32>,
    %c0_11 = arith.constant 0 : index
    %c1 = arith.constant 1 : index
    %c0_12 = arith.constant 0 : index
    %9 = vector.load %arg1[%c0_11, %c1, %c0_12] : memref<1x132x64xbf16, #tpu.memory_space<vmem>>, vector<1x99x64xbf16>
    %10 = vector.shape_cast %9 : vector<1x99x64xbf16> to vector<99x64xbf16>
    %c64 = arith.constant 64 : index
    %c0_13 = arith.constant 0 : index
    %11 = vector.load %arg2[%c64, %c0_13] : memref<576x128xbf16, #tpu.memory_space<vmem>>, vector<64x128xbf16>
    %c0_14 = arith.constant 0 : index
    %c0_15 = arith.constant 0 : index
    %12 = vector.load %arg5[%c0_14, %c0_15] : memref<99x128xf32, #tpu.memory_space<vmem>>, vector<99x128xf32>
    %cst_16 = arith.constant dense<0.000000e+00> : vector<99x128xf32>
    %13 = tpu.matmul %10, %11, %cst_16 {dimension_numbers = #tpu.dot_dimension_numbers<[1], [0], [0], [1], [0, 0, 1, 1], [], []>} : vector<99x64xbf16>, vector<64x128xbf16>, vector<99x128xf32> -> vector<99x128xf32>
    %14 = arith.addf %12, %13 : vector<99x128xf32>
    %c0_17 = arith.constant 0 : index
    %c0_18 = arith.constant 0 : index
    %15 = vector.load %arg5[%c0_17, %c0_18] : memref<99x128xf32, #tpu.memory_space<vmem>>, vector<99x128xf32>
    tpu.vector_store %arg5[%c0_17, %c0_18], %14 {strides = array<i32>} : memref<99x128xf32, #tpu.memory_space<vmem>>, vector<99x128xf32>,
    %c0_19 = arith.constant 0 : index
    %c2 = arith.constant 2 : index
    %c0_20 = arith.constant 0 : index
    %16 = vector.load %arg1[%c0_19, %c2, %c0_20] : memref<1x132x64xbf16, #tpu.memory_space<vmem>>, vector<1x99x64xbf16>
    %17 = vector.shape_cast %16 : vector<1x99x64xbf16> to vector<99x64xbf16>
    %c128 = arith.constant 128 : index
    %c0_21 = arith.constant 0 : index
    %18 = vector.load %arg2[%c128, %c0_21] : memref<576x128xbf16, #tpu.memory_space<vmem>>, vector<64x128xbf16>
    %c0_22 = arith.constant 0 : index
    %c0_23 = arith.constant 0 : index
    %19 = vector.load %arg5[%c0_22, %c0_23] : memref<99x128xf32, #tpu.memory_space<vmem>>, vector<99x128xf32>
    %cst_24 = arith.constant dense<0.000000e+00> : vector<99x128xf32>
    %20 = tpu.matmul %17, %18, %cst_24 {dimension_numbers = #tpu.dot_dimension_numbers<[1], [0], [0], [1], [0, 0, 1, 1], [], []>} : vector<99x64xbf16>, vector<64x128xbf16>, vector<99x128xf32> -> vector<99x128xf32>
    %21 = arith.addf %19, %20 : vector<99x128xf32>
    %c0_25 = arith.constant 0 : index
    %c0_26 = arith.constant 0 : index
    %22 = vector.load %arg5[%c0_25, %c0_26] : memref<99x128xf32, #tpu.memory_space<vmem>>, vector<99x128xf32>
    tpu.vector_store %arg5[%c0_25, %c0_26], %21 {strides = array<i32>} : memref<99x128xf32, #tpu.memory_space<vmem>>, vector<99x128xf32>,
    %c0_27 = arith.constant 0 : index
    %c11 = arith.constant 11 : index
    %c0_28 = arith.constant 0 : index
    %23 = vector.load %arg1[%c0_27, %c11, %c0_28] : memref<1x132x64xbf16, #tpu.memory_space<vmem>>, vector<1x99x64xbf16>
    %24 = vector.shape_cast %23 : vector<1x99x64xbf16> to vector<99x64xbf16>
    %c192 = arith.constant 192 : index
    %c0_29 = arith.constant 0 : index
    %25 = vector.load %arg2[%c192, %c0_29] : memref<576x128xbf16, #tpu.memory_space<vmem>>, vector<64x128xbf16>
    %c0_30 = arith.constant 0 : index
    %c0_31 = arith.constant 0 : index
    %26 = vector.load %arg5[%c0_30, %c0_31] : memref<99x128xf32, #tpu.memory_space<vmem>>, vector<99x128xf32>
    %cst_32 = arith.constant dense<0.000000e+00> : vector<99x128xf32>
    %27 = tpu.matmul %24, %25, %cst_32 {dimension_numbers = #tpu.dot_dimension_numbers<[1], [0], [0], [1], [0, 0, 1, 1], [], []>} : vector<99x64xbf16>, vector<64x128xbf16>, vector<99x128xf32> -> vector<99x128xf32>
    %28 = arith.addf %26, %27 : vector<99x128xf32>
    %c0_33 = arith.constant 0 : index
    %c0_34 = arith.constant 0 : index
    %29 = vector.load %arg5[%c0_33, %c0_34] : memref<99x128xf32, #tpu.memory_space<vmem>>, vector<99x128xf32>
    tpu.vector_store %arg5[%c0_33, %c0_34], %28 {strides = array<i32>} : memref<99x128xf32, #tpu.memory_space<vmem>>, vector<99x128xf32>,
    %c0_35 = arith.constant 0 : index
    %c12 = arith.constant 12 : index
    %c0_36 = arith.constant 0 : index
    %30 = vector.load %arg1[%c0_35, %c12, %c0_36] : memref<1x132x64xbf16, #tpu.memory_space<vmem>>, vector<1x99x64xbf16>
    %31 = vector.shape_cast %30 : vector<1x99x64xbf16> to vector<99x64xbf16>
    %c256 = arith.constant 256 : index
    %c0_37 = arith.constant 0 : index
    %32 = vector.load %arg2[%c256, %c0_37] : memref<576x128xbf16, #tpu.memory_space<vmem>>, vector<64x128xbf16>
    %c0_38 = arith.constant 0 : index
    %c0_39 = arith.constant 0 : index
    %33 = vector.load %arg5[%c0_38, %c0_39] : memref<99x128xf32, #tpu.memory_space<vmem>>, vector<99x128xf32>
    %cst_40 = arith.constant dense<0.000000e+00> : vector<99x128xf32>
    %34 = tpu.matmul %31, %32, %cst_40 {dimension_numbers = #tpu.dot_dimension_numbers<[1], [0], [0], [1], [0, 0, 1, 1], [], []>} : vector<99x64xbf16>, vector<64x128xbf16>, vector<99x128xf32> -> vector<99x128xf32>
    %35 = arith.addf %33, %34 : vector<99x128xf32>
    %c0_41 = arith.constant 0 : index
    %c0_42 = arith.constant 0 : index
    %36 = vector.load %arg5[%c0_41, %c0_42] : memref<99x128xf32, #tpu.memory_space<vmem>>, vector<99x128xf32>
    tpu.vector_store %arg5[%c0_41, %c0_42], %35 {strides = array<i32>} : memref<99x128xf32, #tpu.memory_space<vmem>>, vector<99x128xf32>,
    %c0_43 = arith.constant 0 : index
    %c13 = arith.constant 13 : index
    %c0_44 = arith.constant 0 : index
    %37 = vector.load %arg1[%c0_43, %c13, %c0_44] : memref<1x132x64xbf16, #tpu.memory_space<vmem>>, vector<1x99x64xbf16>
    %38 = vector.shape_cast %37 : vector<1x99x64xbf16> to vector<99x64xbf16>
    %c320 = arith.constant 320 : index
    %c0_45 = arith.constant 0 : index
    %39 = vector.load %arg2[%c320, %c0_45] : memref<576x128xbf16, #tpu.memory_space<vmem>>, vector<64x128xbf16>
    %c0_46 = arith.constant 0 : index
    %c0_47 = arith.constant 0 : index
    %40 = vector.load %arg5[%c0_46, %c0_47] : memref<99x128xf32, #tpu.memory_space<vmem>>, vector<99x128xf32>
    %cst_48 = arith.constant dense<0.000000e+00> : vector<99x128xf32>
    %41 = tpu.matmul %38, %39, %cst_48 {dimension_numbers = #tpu.dot_dimension_numbers<[1], [0], [0], [1], [0, 0, 1, 1], [], []>} : vector<99x64xbf16>, vector<64x128xbf16>, vector<99x128xf32> -> vector<99x128xf32>
    %42 = arith.addf %40, %41 : vector<99x128xf32>
    %c0_49 = arith.constant 0 : index
    %c0_50 = arith.constant 0 : index
    %43 = vector.load %arg5[%c0_49, %c0_50] : memref<99x128xf32, #tpu.memory_space<vmem>>, vector<99x128xf32>
    tpu.vector_store %arg5[%c0_49, %c0_50], %42 {strides = array<i32>} : memref<99x128xf32, #tpu.memory_space<vmem>>, vector<99x128xf32>,
    %c0_51 = arith.constant 0 : index
    %c22 = arith.constant 22 : index
    %c0_52 = arith.constant 0 : index
    %44 = vector.load %arg1[%c0_51, %c22, %c0_52] : memref<1x132x64xbf16, #tpu.memory_space<vmem>>, vector<1x99x64xbf16>
    %45 = vector.shape_cast %44 : vector<1x99x64xbf16> to vector<99x64xbf16>
    %c384 = arith.constant 384 : index
    %c0_53 = arith.constant 0 : index
    %46 = vector.load %arg2[%c384, %c0_53] : memref<576x128xbf16, #tpu.memory_space<vmem>>, vector<64x128xbf16>
    %c0_54 = arith.constant 0 : index
    %c0_55 = arith.constant 0 : index
    %47 = vector.load %arg5[%c0_54, %c0_55] : memref<99x128xf32, #tpu.memory_space<vmem>>, vector<99x128xf32>
    %cst_56 = arith.constant dense<0.000000e+00> : vector<99x128xf32>
    %48 = tpu.matmul %45, %46, %cst_56 {dimension_numbers = #tpu.dot_dimension_numbers<[1], [0], [0], [1], [0, 0, 1, 1], [], []>} : vector<99x64xbf16>, vector<64x128xbf16>, vector<99x128xf32> -> vector<99x128xf32>
    %49 = arith.addf %47, %48 : vector<99x128xf32>
    %c0_57 = arith.constant 0 : index
    %c0_58 = arith.constant 0 : index
    %50 = vector.load %arg5[%c0_57, %c0_58] : memref<99x128xf32, #tpu.memory_space<vmem>>, vector<99x128xf32>
    tpu.vector_store %arg5[%c0_57, %c0_58], %49 {strides = array<i32>} : memref<99x128xf32, #tpu.memory_space<vmem>>, vector<99x128xf32>,
    %c0_59 = arith.constant 0 : index
    %c23 = arith.constant 23 : index
    %c0_60 = arith.constant 0 : index
    %51 = vector.load %arg1[%c0_59, %c23, %c0_60] : memref<1x132x64xbf16, #tpu.memory_space<vmem>>, vector<1x99x64xbf16>
    %52 = vector.shape_cast %51 : vector<1x99x64xbf16> to vector<99x64xbf16>
    %c448 = arith.constant 448 : index
    %c0_61 = arith.constant 0 : index
    %53 = vector.load %arg2[%c448, %c0_61] : memref<576x128xbf16, #tpu.memory_space<vmem>>, vector<64x128xbf16>
    %c0_62 = arith.constant 0 : index
    %c0_63 = arith.constant 0 : index
    %54 = vector.load %arg5[%c0_62, %c0_63] : memref<99x128xf32, #tpu.memory_space<vmem>>, vector<99x128xf32>
    %cst_64 = arith.constant dense<0.000000e+00> : vector<99x128xf32>
    %55 = tpu.matmul %52, %53, %cst_64 {dimension_numbers = #tpu.dot_dimension_numbers<[1], [0], [0], [1], [0, 0, 1, 1], [], []>} : vector<99x64xbf16>, vector<64x128xbf16>, vector<99x128xf32> -> vector<99x128xf32>
    %56 = arith.addf %54, %55 : vector<99x128xf32>
    %c0_65 = arith.constant 0 : index
    %c0_66 = arith.constant 0 : index
    %57 = vector.load %arg5[%c0_65, %c0_66] : memref<99x128xf32, #tpu.memory_space<vmem>>, vector<99x128xf32>
    tpu.vector_store %arg5[%c0_65, %c0_66], %56 {strides = array<i32>} : memref<99x128xf32, #tpu.memory_space<vmem>>, vector<99x128xf32>,
    %c0_67 = arith.constant 0 : index
    %c24 = arith.constant 24 : index
    %c0_68 = arith.constant 0 : index
    %58 = vector.load %arg1[%c0_67, %c24, %c0_68] : memref<1x132x64xbf16, #tpu.memory_space<vmem>>, vector<1x99x64xbf16>
    %59 = vector.shape_cast %58 : vector<1x99x64xbf16> to vector<99x64xbf16>
    %c512 = arith.constant 512 : index
    %c0_69 = arith.constant 0 : index
    %60 = vector.load %arg2[%c512, %c0_69] : memref<576x128xbf16, #tpu.memory_space<vmem>>, vector<64x128xbf16>
    %c0_70 = arith.constant 0 : index
    %c0_71 = arith.constant 0 : index
    %61 = vector.load %arg5[%c0_70, %c0_71] : memref<99x128xf32, #tpu.memory_space<vmem>>, vector<99x128xf32>
    %cst_72 = arith.constant dense<0.000000e+00> : vector<99x128xf32>
    %62 = tpu.matmul %59, %60, %cst_72 {dimension_numbers = #tpu.dot_dimension_numbers<[1], [0], [0], [1], [0, 0, 1, 1], [], []>} : vector<99x64xbf16>, vector<64x128xbf16>, vector<99x128xf32> -> vector<99x128xf32>
    %63 = arith.addf %61, %62 : vector<99x128xf32>
    %c0_73 = arith.constant 0 : index
    %c0_74 = arith.constant 0 : index
    %64 = vector.load %arg5[%c0_73, %c0_74] : memref<99x128xf32, #tpu.memory_space<vmem>>, vector<99x128xf32>
    tpu.vector_store %arg5[%c0_73, %c0_74], %63 {strides = array<i32>} : memref<99x128xf32, #tpu.memory_space<vmem>>, vector<99x128xf32>,
    %c0_75 = arith.constant 0 : index
    %c0_76 = arith.constant 0 : index
    %65 = vector.load %arg3[%c0_75, %c0_76] : memref<1x128xf32, #tpu.memory_space<vmem>>, vector<1x128xf32>
    %c0_77 = arith.constant 0 : index
    %c0_78 = arith.constant 0 : index
    %66 = vector.load %arg5[%c0_77, %c0_78] : memref<99x128xf32, #tpu.memory_space<vmem>>, vector<9x128xf32>
    %67 = vector.broadcast %65 : vector<1x128xf32> to vector<9x128xf32>
    %68 = arith.addf %66, %67 : vector<9x128xf32>
    %cst_79 = arith.constant 0.000000e+00 : f32
    %69 = vector.broadcast %cst_79 : f32 to vector<9x128xf32>
    %70 = arith.maximumf %68, %69 : vector<9x128xf32>
    %71 = arith.truncf %70 : vector<9x128xf32> to vector<9x128xbf16>
    %c0_80 = arith.constant 0 : index
    %c0_81 = arith.constant 0 : index
    %c0_82 = arith.constant 0 : index
    %c0_83 = arith.constant 0 : index
    %72 = vector.load %arg4[%c0_80, %c0_81, %c0_82, %c0_83] : memref<1x9x9x128xbf16, #tpu.memory_space<vmem>>, vector<1x1x9x128xbf16>
    %73 = vector.shape_cast %72 : vector<1x1x9x128xbf16> to vector<9x128xbf16>
    %74 = vector.shape_cast %71 : vector<9x128xbf16> to vector<1x1x9x128xbf16>
    tpu.vector_store %arg4[%c0_80, %c0_81, %c0_82, %c0_83], %74 {strides = array<i32>} : memref<1x9x9x128xbf16, #tpu.memory_space<vmem>>, vector<1x1x9x128xbf16>,
    %c11_84 = arith.constant 11 : index
    %c0_85 = arith.constant 0 : index
    %75 = vector.load %arg5[%c11_84, %c0_85] : memref<99x128xf32, #tpu.memory_space<vmem>>, vector<9x128xf32>
    %76 = vector.broadcast %65 : vector<1x128xf32> to vector<9x128xf32>
    %77 = arith.addf %75, %76 : vector<9x128xf32>
    %cst_86 = arith.constant 0.000000e+00 : f32
    %78 = vector.broadcast %cst_86 : f32 to vector<9x128xf32>
    %79 = arith.maximumf %77, %78 : vector<9x128xf32>
    %80 = arith.truncf %79 : vector<9x128xf32> to vector<9x128xbf16>
    %c0_87 = arith.constant 0 : index
    %c1_88 = arith.constant 1 : index
    %c0_89 = arith.constant 0 : index
    %c0_90 = arith.constant 0 : index
    %81 = vector.load %arg4[%c0_87, %c1_88, %c0_89, %c0_90] : memref<1x9x9x128xbf16, #tpu.memory_space<vmem>>, vector<1x1x9x128xbf16>
    %82 = vector.shape_cast %81 : vector<1x1x9x128xbf16> to vector<9x128xbf16>
    %83 = vector.shape_cast %80 : vector<9x128xbf16> to vector<1x1x9x128xbf16>
    tpu.vector_store %arg4[%c0_87, %c1_88, %c0_89, %c0_90], %83 {strides = array<i32>} : memref<1x9x9x128xbf16, #tpu.memory_space<vmem>>, vector<1x1x9x128xbf16>,
    %c22_91 = arith.constant 22 : index
    %c0_92 = arith.constant 0 : index
    %84 = vector.load %arg5[%c22_91, %c0_92] : memref<99x128xf32, #tpu.memory_space<vmem>>, vector<9x128xf32>
    %85 = vector.broadcast %65 : vector<1x128xf32> to vector<9x128xf32>
    %86 = arith.addf %84, %85 : vector<9x128xf32>
    %cst_93 = arith.constant 0.000000e+00 : f32
    %87 = vector.broadcast %cst_93 : f32 to vector<9x128xf32>
    %88 = arith.maximumf %86, %87 : vector<9x128xf32>
    %89 = arith.truncf %88 : vector<9x128xf32> to vector<9x128xbf16>
    %c0_94 = arith.constant 0 : index
    %c2_95 = arith.constant 2 : index
    %c0_96 = arith.constant 0 : index
    %c0_97 = arith.constant 0 : index
    %90 = vector.load %arg4[%c0_94, %c2_95, %c0_96, %c0_97] : memref<1x9x9x128xbf16, #tpu.memory_space<vmem>>, vector<1x1x9x128xbf16>
    %91 = vector.shape_cast %90 : vector<1x1x9x128xbf16> to vector<9x128xbf16>
    %92 = vector.shape_cast %89 : vector<9x128xbf16> to vector<1x1x9x128xbf16>
    tpu.vector_store %arg4[%c0_94, %c2_95, %c0_96, %c0_97], %92 {strides = array<i32>} : memref<1x9x9x128xbf16, #tpu.memory_space<vmem>>, vector<1x1x9x128xbf16>,
    %c33 = arith.constant 33 : index
    %c0_98 = arith.constant 0 : index
    %93 = vector.load %arg5[%c33, %c0_98] : memref<99x128xf32, #tpu.memory_space<vmem>>, vector<9x128xf32>
    %94 = vector.broadcast %65 : vector<1x128xf32> to vector<9x128xf32>
    %95 = arith.addf %93, %94 : vector<9x128xf32>
    %cst_99 = arith.constant 0.000000e+00 : f32
    %96 = vector.broadcast %cst_99 : f32 to vector<9x128xf32>
    %97 = arith.maximumf %95, %96 : vector<9x128xf32>
    %98 = arith.truncf %97 : vector<9x128xf32> to vector<9x128xbf16>
    %c0_100 = arith.constant 0 : index
    %c3 = arith.constant 3 : index
    %c0_101 = arith.constant 0 : index
    %c0_102 = arith.constant 0 : index
    %99 = vector.load %arg4[%c0_100, %c3, %c0_101, %c0_102] : memref<1x9x9x128xbf16, #tpu.memory_space<vmem>>, vector<1x1x9x128xbf16>
    %100 = vector.shape_cast %99 : vector<1x1x9x128xbf16> to vector<9x128xbf16>
    %101 = vector.shape_cast %98 : vector<9x128xbf16> to vector<1x1x9x128xbf16>
    tpu.vector_store %arg4[%c0_100, %c3, %c0_101, %c0_102], %101 {strides = array<i32>} : memref<1x9x9x128xbf16, #tpu.memory_space<vmem>>, vector<1x1x9x128xbf16>,
    %c44 = arith.constant 44 : index
    %c0_103 = arith.constant 0 : index
    %102 = vector.load %arg5[%c44, %c0_103] : memref<99x128xf32, #tpu.memory_space<vmem>>, vector<9x128xf32>
    %103 = vector.broadcast %65 : vector<1x128xf32> to vector<9x128xf32>
    %104 = arith.addf %102, %103 : vector<9x128xf32>
    %cst_104 = arith.constant 0.000000e+00 : f32
    %105 = vector.broadcast %cst_104 : f32 to vector<9x128xf32>
    %106 = arith.maximumf %104, %105 : vector<9x128xf32>
    %107 = arith.truncf %106 : vector<9x128xf32> to vector<9x128xbf16>
    %c0_105 = arith.constant 0 : index
    %c4 = arith.constant 4 : index
    %c0_106 = arith.constant 0 : index
    %c0_107 = arith.constant 0 : index
    %108 = vector.load %arg4[%c0_105, %c4, %c0_106, %c0_107] : memref<1x9x9x128xbf16, #tpu.memory_space<vmem>>, vector<1x1x9x128xbf16>
    %109 = vector.shape_cast %108 : vector<1x1x9x128xbf16> to vector<9x128xbf16>
    %110 = vector.shape_cast %107 : vector<9x128xbf16> to vector<1x1x9x128xbf16>
    tpu.vector_store %arg4[%c0_105, %c4, %c0_106, %c0_107], %110 {strides = array<i32>} : memref<1x9x9x128xbf16, #tpu.memory_space<vmem>>, vector<1x1x9x128xbf16>,
    %c55 = arith.constant 55 : index
    %c0_108 = arith.constant 0 : index
    %111 = vector.load %arg5[%c55, %c0_108] : memref<99x128xf32, #tpu.memory_space<vmem>>, vector<9x128xf32>
    %112 = vector.broadcast %65 : vector<1x128xf32> to vector<9x128xf32>
    %113 = arith.addf %111, %112 : vector<9x128xf32>
    %cst_109 = arith.constant 0.000000e+00 : f32
    %114 = vector.broadcast %cst_109 : f32 to vector<9x128xf32>
    %115 = arith.maximumf %113, %114 : vector<9x128xf32>
    %116 = arith.truncf %115 : vector<9x128xf32> to vector<9x128xbf16>
    %c0_110 = arith.constant 0 : index
    %c5 = arith.constant 5 : index
    %c0_111 = arith.constant 0 : index
    %c0_112 = arith.constant 0 : index
    %117 = vector.load %arg4[%c0_110, %c5, %c0_111, %c0_112] : memref<1x9x9x128xbf16, #tpu.memory_space<vmem>>, vector<1x1x9x128xbf16>
    %118 = vector.shape_cast %117 : vector<1x1x9x128xbf16> to vector<9x128xbf16>
    %119 = vector.shape_cast %116 : vector<9x128xbf16> to vector<1x1x9x128xbf16>
    tpu.vector_store %arg4[%c0_110, %c5, %c0_111, %c0_112], %119 {strides = array<i32>} : memref<1x9x9x128xbf16, #tpu.memory_space<vmem>>, vector<1x1x9x128xbf16>,
    %c66 = arith.constant 66 : index
    %c0_113 = arith.constant 0 : index
    %120 = vector.load %arg5[%c66, %c0_113] : memref<99x128xf32, #tpu.memory_space<vmem>>, vector<9x128xf32>
    %121 = vector.broadcast %65 : vector<1x128xf32> to vector<9x128xf32>
    %122 = arith.addf %120, %121 : vector<9x128xf32>
    %cst_114 = arith.constant 0.000000e+00 : f32
    %123 = vector.broadcast %cst_114 : f32 to vector<9x128xf32>
    %124 = arith.maximumf %122, %123 : vector<9x128xf32>
    %125 = arith.truncf %124 : vector<9x128xf32> to vector<9x128xbf16>
    %c0_115 = arith.constant 0 : index
    %c6 = arith.constant 6 : index
    %c0_116 = arith.constant 0 : index
    %c0_117 = arith.constant 0 : index
    %126 = vector.load %arg4[%c0_115, %c6, %c0_116, %c0_117] : memref<1x9x9x128xbf16, #tpu.memory_space<vmem>>, vector<1x1x9x128xbf16>
    %127 = vector.shape_cast %126 : vector<1x1x9x128xbf16> to vector<9x128xbf16>
    %128 = vector.shape_cast %125 : vector<9x128xbf16> to vector<1x1x9x128xbf16>
    tpu.vector_store %arg4[%c0_115, %c6, %c0_116, %c0_117], %128 {strides = array<i32>} : memref<1x9x9x128xbf16, #tpu.memory_space<vmem>>, vector<1x1x9x128xbf16>,
    %c77 = arith.constant 77 : index
    %c0_118 = arith.constant 0 : index
    %129 = vector.load %arg5[%c77, %c0_118] : memref<99x128xf32, #tpu.memory_space<vmem>>, vector<9x128xf32>
    %130 = vector.broadcast %65 : vector<1x128xf32> to vector<9x128xf32>
    %131 = arith.addf %129, %130 : vector<9x128xf32>
    %cst_119 = arith.constant 0.000000e+00 : f32
    %132 = vector.broadcast %cst_119 : f32 to vector<9x128xf32>
    %133 = arith.maximumf %131, %132 : vector<9x128xf32>
    %134 = arith.truncf %133 : vector<9x128xf32> to vector<9x128xbf16>
    %c0_120 = arith.constant 0 : index
    %c7 = arith.constant 7 : index
    %c0_121 = arith.constant 0 : index
    %c0_122 = arith.constant 0 : index
    %135 = vector.load %arg4[%c0_120, %c7, %c0_121, %c0_122] : memref<1x9x9x128xbf16, #tpu.memory_space<vmem>>, vector<1x1x9x128xbf16>
    %136 = vector.shape_cast %135 : vector<1x1x9x128xbf16> to vector<9x128xbf16>
    %137 = vector.shape_cast %134 : vector<9x128xbf16> to vector<1x1x9x128xbf16>
    tpu.vector_store %arg4[%c0_120, %c7, %c0_121, %c0_122], %137 {strides = array<i32>} : memref<1x9x9x128xbf16, #tpu.memory_space<vmem>>, vector<1x1x9x128xbf16>,
    %c88 = arith.constant 88 : index
    %c0_123 = arith.constant 0 : index
    %138 = vector.load %arg5[%c88, %c0_123] : memref<99x128xf32, #tpu.memory_space<vmem>>, vector<9x128xf32>
    %139 = vector.broadcast %65 : vector<1x128xf32> to vector<9x128xf32>
    %140 = arith.addf %138, %139 : vector<9x128xf32>
    %cst_124 = arith.constant 0.000000e+00 : f32
    %141 = vector.broadcast %cst_124 : f32 to vector<9x128xf32>
    %142 = arith.maximumf %140, %141 : vector<9x128xf32>
    %143 = arith.truncf %142 : vector<9x128xf32> to vector<9x128xbf16>
    %c0_125 = arith.constant 0 : index
    %c8 = arith.constant 8 : index
    %c0_126 = arith.constant 0 : index
    %c0_127 = arith.constant 0 : index
    %144 = vector.load %arg4[%c0_125, %c8, %c0_126, %c0_127] : memref<1x9x9x128xbf16, #tpu.memory_space<vmem>>, vector<1x1x9x128xbf16>
    %145 = vector.shape_cast %144 : vector<1x1x9x128xbf16> to vector<9x128xbf16>
    %146 = vector.shape_cast %143 : vector<9x128xbf16> to vector<1x1x9x128xbf16>
    tpu.vector_store %arg4[%c0_125, %c8, %c0_126, %c0_127], %146 {strides = array<i32>} : memref<1x9x9x128xbf16, #tpu.memory_space<vmem>>, vector<1x1x9x128xbf16>,
    return
  }
  func.func @transform_0(%arg0: i32) -> (i32, i32, i32) {
    %c0_i32 = arith.constant 0 : i32
    %c0_i32_0 = arith.constant 0 : i32
    %c0_i32_1 = arith.constant 0 : i32
    return %arg0, %c0_i32, %c0_i32_0 : i32, i32, i32
  }
  func.func @transform_1(%arg0: i32) -> (i32, i32) {
    %c0_i32 = arith.constant 0 : i32
    %c0_i32_0 = arith.constant 0 : i32
    %c0_i32_1 = arith.constant 0 : i32
    return %c0_i32, %c0_i32_0 : i32, i32
  }
  func.func @transform_2(%arg0: i32) -> (i32, i32) {
    %c0_i32 = arith.constant 0 : i32
    %c0_i32_0 = arith.constant 0 : i32
    %c0_i32_1 = arith.constant 0 : i32
    return %c0_i32, %c0_i32_0 : i32, i32
  }
  func.func @transform_3(%arg0: i32) -> (i32, i32, i32, i32) {
    %c0_i32 = arith.constant 0 : i32
    %c0_i32_0 = arith.constant 0 : i32
    %c0_i32_1 = arith.constant 0 : i32
    %c0_i32_2 = arith.constant 0 : i32
    return %arg0, %c0_i32, %c0_i32_0, %c0_i32_1 : i32, i32, i32, i32
  }
}

</mosaic_0001>

<llo_original>
// kernel: tpu_custom_call.1
$region0: #{tpu_custom_call.1}
  #allocation0 [shape = 'u32[]', space=smem, size = 0x4, offset = 0x4, fixed_abs, tag = 'smem constant byte address 0x4 - core index']
  #allocation1 [shape = 'u32[144,128]{1,0:T(1,128)}', space=vmem, size = 0x12000, scoped, tag = 'internal scratch']
  #allocation2 [shape = 'f32[99,128]{1,0:T(8,128)}', space=vmem, size = 0xd000, scoped, tag = 'scratch operand']
  %s0 = inlined_call_operand.vmem [shape: bf16[1,132,64], index: 0, kind: input, shape index: {}]
  %s1 = inlined_call_operand.hbm [shape: bf16[576,128], index: 1, kind: input, shape index: {}]
  %s2 = inlined_call_operand.vmem [shape: f32[1,128], index: 2, kind: input, shape index: {}]
  %s3 = inlined_call_operand.hbm [shape: bf16[1,9,9,128], index: 3, kind: output, shape index: {}]
  %s4 = sld [smem:[#allocation0]]
  $region26: #{tpu_custom_call.1} parent=0
    _
  %s6 = ssub.s32 1, %s4
  %s7 = scalar_select 0, %s6, %s4
  $region1: #{tpu_custom_call.1} parent=0
    #allocation3 [shape = 'u8[147456]{0}', space=vmem, size = 0x24000, scoped, tag = 'input window, operand 1, single buffered']
    #allocation4 [shape = 's32[1]{0}', space=sflag, size = 0x4, scoped, tag = 'scoped memory for tpu_custom_call.1']
    #allocation5 [shape = 's32[1]{0}', space=sflag, size = 0x4, scoped, tag = 'scoped memory for tpu_custom_call.1']
    #allocation6 [shape = 'u8[36864]{0}', space=vmem, size = 0x9000, scoped, tag = 'output window, operand 0, single buffered']
    %8 = vsyncpa [#allocation4], 0
    %9 = vsyncpa [#allocation5], 0
    // Predicated region
    $region2: #{tpu_custom_call.1} parent=1 // pred_check
      _
    $region3: #{tpu_custom_call.1} parent=1 // pred_check_branch
      %11 = sbr.rel (0) target = $region5
    $region4: #{tpu_custom_call.1} parent=1 // pred_region
      _
    $region5: #{tpu_custom_call.1} parent=1 // pred_fallthru
      _
    // Predicated region
    $region6: #{tpu_custom_call.1} parent=1 // pred_check
      _
    $region7: #{tpu_custom_call.1} parent=1 // pred_check_branch
      %13 = sbr.rel (0) target = $region9
    $region8: #{tpu_custom_call.1} parent=1 // pred_region
      %s15 = ssub.s32 4608, 4608
      %16 = vsyncadd [#allocation4], %s15
      %s17 = sshll.u32 [#allocation3], 4
      %s18 = int_to_ptr.vmem [resolvable:$true] %s17
      %23 = dma.hbm_to_vmem [thread:$0]  %s1, 4608, %s18, [#allocation4], 64, 64, 4
    $region9: #{tpu_custom_call.1} parent=1 // pred_fallthru
      _
    // Predicated region
    $region10: #{tpu_custom_call.1} parent=1 // pred_check
      _
    $region11: #{tpu_custom_call.1} parent=1 // pred_check_branch
      %25 = sbr.rel (0) target = $region13
    $region12: #{tpu_custom_call.1} parent=1 // pred_region
      _
    $region13: #{tpu_custom_call.1} parent=1 // pred_fallthru
      _
    // Predicated region
    $region14: #{tpu_custom_call.1} parent=1 // pred_check
      _
    $region15: #{tpu_custom_call.1} parent=1 // pred_check_branch
      %27 = sbr.rel (0) target = $region17
    $region16: #{tpu_custom_call.1} parent=1 // pred_region
      %28 = dma.done [#allocation4], 4608
    $region17: #{tpu_custom_call.1} parent=1 // pred_fallthru
      _
    %30 = vst [vmem:[#allocation2] sm:$0xff] 0.0
    %31 = vst [vmem:[#allocation2 + $0x8] sm:$0xff] 0.0
    %32 = vst [vmem:[#allocation2 + $0x10] sm:$0xff] 0.0
    %33 = vst [vmem:[#allocation2 + $0x18] sm:$0xff] 0.0
    %34 = vst [vmem:[#allocation2 + $0x20] sm:$0xff] 0.0
    %35 = vst [vmem:[#allocation2 + $0x28] sm:$0xff] 0.0
    %36 = vst [vmem:[#allocation2 + $0x30] sm:$0xff] 0.0
    %37 = vst [vmem:[#allocation2 + $0x38] sm:$0xff] 0.0
    %38 = vst [vmem:[#allocation2 + $0x40] sm:$0xff] 0.0
    %39 = vst [vmem:[#allocation2 + $0x48] sm:$0xff] 0.0
    %40 = vst [vmem:[#allocation2 + $0x50] sm:$0xff] 0.0
    %41 = vst [vmem:[#allocation2 + $0x58] sm:$0xff] 0.0
    %42 = vst [vmem:[#allocation2 + $0x60] sm:$0x7] 0.0
    %v43 = vld [vmem:[%s0] sm:$0xf]
    %v44 = vld [vmem:[%s0 + $0x4] sm:$0xf]
    %v45 = vld [vmem:[%s0 + $0x8] sm:$0xf]
    %v46 = vld [vmem:[%s0 + $0xc] sm:$0xf]
    %v47 = vld [vmem:[%s0 + $0x10] sm:$0xf]
    %v48 = vld [vmem:[%s0 + $0x14] sm:$0xf]
    %v49 = vld [vmem:[%s0 + $0x18] sm:$0xf]
    %v50 = vld [vmem:[%s0 + $0x1c] sm:$0xf]
    %v51 = vld [vmem:[%s0 + $0x20] sm:$0xf]
    %v52 = vld [vmem:[%s0 + $0x24] sm:$0xf]
    %v53 = vld [vmem:[%s0 + $0x28] sm:$0xf]
    %v54 = vld [vmem:[%s0 + $0x2c] sm:$0xf]
    %v55 = vld [vmem:[%s0 + $0x30] sm:$0x3]
    %v56 = vld [vmem:[#allocation3] sm:$0xf]
    %v57 = vld [vmem:[#allocation3 + $0x4] sm:$0xf]
    %v58 = vld [vmem:[#allocation3 + $0x8] sm:$0xf]
    %v59 = vld [vmem:[#allocation3 + $0xc] sm:$0xf]
    %v60 = vld [vmem:[#allocation3 + $0x10] sm:$0xf]
    %v61 = vld [vmem:[#allocation3 + $0x14] sm:$0xf]
    %v62 = vld [vmem:[#allocation3 + $0x18] sm:$0xf]
    %v63 = vld [vmem:[#allocation3 + $0x1c] sm:$0xf]
    %v64 = vld [vmem:[#allocation2] sm:$0xff]
    %v65 = vld [vmem:[#allocation2 + $0x8] sm:$0xff]
    %v66 = vld [vmem:[#allocation2 + $0x10] sm:$0xff]
    %v67 = vld [vmem:[#allocation2 + $0x18] sm:$0xff]
    %v68 = vld [vmem:[#allocation2 + $0x20] sm:$0xff]
    %v69 = vld [vmem:[#allocation2 + $0x28] sm:$0xff]
    %v70 = vld [vmem:[#allocation2 + $0x30] sm:$0xff]
    %v71 = vld [vmem:[#allocation2 + $0x38] sm:$0xff]
    %v72 = vld [vmem:[#allocation2 + $0x40] sm:$0xff]
    %v73 = vld [vmem:[#allocation2 + $0x48] sm:$0xff]
    %v74 = vld [vmem:[#allocation2 + $0x50] sm:$0xff]
    %v75 = vld [vmem:[#allocation2 + $0x58] sm:$0xff]
    %v76 = vld [vmem:[#allocation2 + $0x60] sm:$0x7]
    %v90 = vunpack.c.l.b16 %v43
    %v91 = vunpack.c.l.b16 %v44
    %v92 = vunpack.c.l.b16 %v45
    %v93 = vunpack.c.l.b16 %v46
    %v94 = vunpack.c.l.b16 %v47
    %v95 = vunpack.c.l.b16 %v48
    %v96 = vunpack.c.l.b16 %v49
    %v97 = vunpack.c.l.b16 %v50
    %v98 = vunpack.c.l.b16 %v51
    %v99 = vunpack.c.l.b16 %v52
    %v100 = vunpack.c.l.b16 %v53
    %v101 = vunpack.c.l.b16 %v54
    %v102 = vunpack.c.l.b16 %v55
    %v103 = vpack.c.b16 %v91, %v90
    %v104 = vpack.c.b16 %v93, %v92
    %v105 = vpack.c.b16 %v95, %v94
    %v106 = vpack.c.b16 %v97, %v96
    %v107 = vpack.c.b16 %v99, %v98
    %v108 = vpack.c.b16 %v101, %v100
    %v109 = vpack.c.b16 %v102, %v102
    %v118 = vunpack.c.l.b16 %v56
    %v119 = vunpack.c.l.b16 %v57
    %v120 = vunpack.c.l.b16 %v58
    %v121 = vunpack.c.l.b16 %v59
    %v122 = vunpack.c.l.b16 %v60
    %v123 = vunpack.c.l.b16 %v61
    %v124 = vunpack.c.l.b16 %v62
    %v125 = vunpack.c.l.b16 %v63
    %v126 = vpack.c.b16 %v119, %v118
    %v127 = vpack.c.b16 %v121, %v120
    %v128 = vpack.c.b16 %v123, %v122
    %v129 = vpack.c.b16 %v125, %v124
    %vm134 = vcmask 523264
    %v136 = vsel %vm134, %v103, 0
    %v139 = vsel %vm134, %v104, 0
    %v142 = vsel %vm134, %v105, 0
    %v145 = vsel %vm134, %v106, 0
    %v148 = vsel %vm134, %v107, 0
    %v151 = vsel %vm134, %v108, 0
    %v154 = vsel %vm134, %v109, 0
    %156 = vmatprep.subr.bf16.mxu0 0
    %157 = vmatpush1.bf16.msra.mxu0 %v126
    %158 = vmatprep.subr.bf16.mxu0 0
    %159 = vmatpush1.bf16.msra.mxu0 %v127
    %160 = vmatprep.subr.bf16.mxu0 0
    %161 = vmatpush1.bf16.msra.mxu0 %v128
    %162 = vmatprep.subr.bf16.mxu0 0
    %163 = vmatpush1.bf16.msra.mxu0 %v129
    %164 = vmatprep.subr.bf16.mxu0 0
    %165 = vmatpush1.bf16.msra.mxu0 0
    %166 = vmatprep.subr.bf16.mxu0 0
    %167 = vmatpush1.bf16.msra.mxu0 0
    %168 = vmatprep.subr.bf16.mxu0 0
    %169 = vmatpush1.bf16.msra.mxu0 0
    %170 = vmatprep.subr.bf16.mxu0 0
    %171 = vmatpush1.bf16.msra.mxu0 0
    %172 = vmatprep.subr.bf16.mxu0 0
    %173 = vmatpush1.bf16.msra.mxu0 0
    %174 = vmatprep.subr.bf16.mxu0 0
    %175 = vmatpush1.bf16.msra.mxu0 0
    %176 = vmatprep.subr.bf16.mxu0 0
    %177 = vmatpush1.bf16.msra.mxu0 0
    %178 = vmatprep.subr.bf16.mxu0 0
    %179 = vmatpush1.bf16.msra.mxu0 0
    %180 = vmatprep.subr.bf16.mxu0 0
    %181 = vmatpush1.bf16.msra.mxu0 0
    %182 = vmatprep.subr.bf16.mxu0 0
    %183 = vmatpush1.bf16.msra.mxu0 0
    %184 = vmatprep.subr.bf16.mxu0 0
    %185 = vmatpush1.bf16.msra.mxu0 0
    %186 = vmatprep.subr.bf16.mxu0 0
    %187 = vmatpush1.bf16.msra.mxu0 0
    %188 = vmatprep.mubr.bf16.mxu0 0
    %189 = vmatmul.mubr.bf16.gmra.mrb[0].mxu0 %v136
    %v190 = vpop.f32.mrb[0].mxu0
    %v191 = vadd.f32 0.0, %v190
    %v192 = vpop.f32.mrb[0].mxu0
    %v193 = vpop.f32.mrb[0].mxu0
    %v194 = vadd.f32 0.0, %v193
    %v195 = vpop.f32.mrb[0].mxu0
    %196 = vmatprep.mubr.bf16.mxu0 0
    %197 = vmatmul.mubr.bf16.gmra.mrb[0].mxu0 %v139
    %v198 = vpop.f32.mrb[0].mxu0
    %v199 = vadd.f32 0.0, %v198
    %v200 = vpop.f32.mrb[0].mxu0
    %v201 = vpop.f32.mrb[0].mxu0
    %v202 = vadd.f32 0.0, %v201
    %v203 = vpop.f32.mrb[0].mxu0
    %204 = vmatprep.mubr.bf16.mxu0 0
    %205 = vmatmul.mubr.bf16.gmra.mrb[0].mxu0 %v142
    %v206 = vpop.f32.mrb[0].mxu0
    %v207 = vadd.f32 0.0, %v206
    %v208 = vpop.f32.mrb[0].mxu0
    %v209 = vpop.f32.mrb[0].mxu0
    %v210 = vadd.f32 0.0, %v209
    %v211 = vpop.f32.mrb[0].mxu0
    %212 = vmatprep.mubr.bf16.mxu0 0
    %213 = vmatmul.mubr.bf16.gmra.mrb[0].mxu0 %v145
    %v214 = vpop.f32.mrb[0].mxu0
    %v215 = vadd.f32 0.0, %v214
    %v216 = vpop.f32.mrb[0].mxu0
    %v217 = vpop.f32.mrb[0].mxu0
    %v218 = vadd.f32 0.0, %v217
    %v219 = vpop.f32.mrb[0].mxu0
    %220 = vmatprep.mubr.bf16.mxu0 0
    %221 = vmatmul.mubr.bf16.gmra.mrb[0].mxu0 %v148
    %v222 = vpop.f32.mrb[0].mxu0
    %v223 = vadd.f32 0.0, %v222
    %v224 = vpop.f32.mrb[0].mxu0
    %v225 = vpop.f32.mrb[0].mxu0
    %v226 = vadd.f32 0.0, %v225
    %v227 = vpop.f32.mrb[0].mxu0
    %228 = vmatprep.mubr.bf16.mxu0 0
    %229 = vmatmul.mubr.bf16.gmra.mrb[0].mxu0 %v151
    %v230 = vpop.f32.mrb[0].mxu0
    %v231 = vadd.f32 0.0, %v230
    %v232 = vpop.f32.mrb[0].mxu0
    %v233 = vpop.f32.mrb[0].mxu0
    %v234 = vadd.f32 0.0, %v233
    %v235 = vpop.f32.mrb[0].mxu0
    %236 = vmatprep.mubr.bf16.mxu0 0
    %237 = vmatmul.mubr.bf16.gmra.mrb[0].mxu0 %v154
    %v238 = vpop.f32.mrb[0].mxu0
    %v239 = vadd.f32 0.0, %v238
    %v240 = vpop.f32.mrb[0].mxu0
    %v241 = vpop.f32.mrb[0].mxu0
    %v242 = vpop.f32.mrb[0].mxu0
    %243 = vdwg.mxu0
    %v244 = vadd.f32 %v64, %v191
    %v245 = vadd.f32 %v65, %v194
    %v246 = vadd.f32 %v66, %v199
    %v247 = vadd.f32 %v67, %v202
    %v248 = vadd.f32 %v68, %v207
    %v249 = vadd.f32 %v69, %v210
    %v250 = vadd.f32 %v70, %v215
    %v251 = vadd.f32 %v71, %v218
    %v252 = vadd.f32 %v72, %v223
    %v253 = vadd.f32 %v73, %v226
    %v254 = vadd.f32 %v74, %v231
    %v255 = vadd.f32 %v75, %v234
    %v256 = vadd.f32 %v76, %v239
    %257 = vst [vmem:[#allocation2] sm:$0xff] %v244
    %258 = vst [vmem:[#allocation2 + $0x8] sm:$0xff] %v245
    %259 = vst [vmem:[#allocation2 + $0x10] sm:$0xff] %v246
    %260 = vst [vmem:[#allocation2 + $0x18] sm:$0xff] %v247
    %261 = vst [vmem:[#allocation2 + $0x20] sm:$0xff] %v248
    %262 = vst [vmem:[#allocation2 + $0x28] sm:$0xff] %v249
    %263 = vst [vmem:[#allocation2 + $0x30] sm:$0xff] %v250
    %264 = vst [vmem:[#allocation2 + $0x38] sm:$0xff] %v251
    %265 = vst [vmem:[#allocation2 + $0x40] sm:$0xff] %v252
    %266 = vst [vmem:[#allocation2 + $0x48] sm:$0xff] %v253
    %267 = vst [vmem:[#allocation2 + $0x50] sm:$0xff] %v254
    %268 = vst [vmem:[#allocation2 + $0x58] sm:$0xff] %v255
    %269 = vst [vmem:[#allocation2 + $0x60] sm:$0x7] %v256
    %v270 = vld [vmem:[%s0] sm:$0xf]
    %v271 = vld [vmem:[%s0 + $0x4] sm:$0xf]
    %v272 = vld [vmem:[%s0 + $0x8] sm:$0xf]
    %v273 = vld [vmem:[%s0 + $0xc] sm:$0xf]
    %v274 = vld [vmem:[%s0 + $0x10] sm:$0xf]
    %v275 = vld [vmem:[%s0 + $0x14] sm:$0xf]
    %v276 = vld [vmem:[%s0 + $0x18] sm:$0xf]
    %v277 = vld [vmem:[%s0 + $0x1c] sm:$0xf]
    %v278 = vld [vmem:[%s0 + $0x20] sm:$0xf]
    %v279 = vld [vmem:[%s0 + $0x24] sm:$0xf]
    %v280 = vld [vmem:[%s0 + $0x28] sm:$0xf]
    %v281 = vld [vmem:[%s0 + $0x2c] sm:$0xf]
    %v282 = vld [vmem:[%s0 + $0x30] sm:$0x3]
    %v283 = vld [vmem:[#allocation3 + $0x20] sm:$0xf]
    %v284 = vld [vmem:[#allocation3 + $0x24] sm:$0xf]
    %v285 = vld [vmem:[#allocation3 + $0x28] sm:$0xf]
    %v286 = vld [vmem:[#allocation3 + $0x2c] sm:$0xf]
    %v287 = vld [vmem:[#allocation3 + $0x30] sm:$0xf]
    %v288 = vld [vmem:[#allocation3 + $0x34] sm:$0xf]
    %v289 = vld [vmem:[#allocation3 + $0x38] sm:$0xf]
    %v290 = vld [vmem:[#allocation3 + $0x3c] sm:$0xf]
    %v291 = vld [vmem:[#allocation2] sm:$0xff]
    %v292 = vld [vmem:[#allocation2 + $0x8] sm:$0xff]
    %v293 = vld [vmem:[#allocation2 + $0x10] sm:$0xff]
    %v294 = vld [vmem:[#allocation2 + $0x18] sm:$0xff]
    %v295 = vld [vmem:[#allocation2 + $0x20] sm:$0xff]
    %v296 = vld [vmem:[#allocation2 + $0x28] sm:$0xff]
    %v297 = vld [vmem:[#allocation2 + $0x30] sm:$0xff]
    %v298 = vld [vmem:[#allocation2 + $0x38] sm:$0xff]
    %v299 = vld [vmem:[#allocation2 + $0x40] sm:$0xff]
    %v300 = vld [vmem:[#allocation2 + $0x48] sm:$0xff]
    %v301 = vld [vmem:[#allocation2 + $0x50] sm:$0xff]
    %v302 = vld [vmem:[#allocation2 + $0x58] sm:$0xff]
    %v303 = vld [vmem:[#allocation2 + $0x60] sm:$0x7]
    %v317 = vunpack.c.l.b16 %v270
    %v318 = vunpack.c.l.b16 %v271
    %v319 = vunpack.c.l.b16 %v272
    %v320 = vunpack.c.l.b16 %v273
    %v321 = vunpack.c.l.b16 %v274
    %v322 = vunpack.c.l.b16 %v275
    %v323 = vunpack.c.l.b16 %v276
    %v324 = vunpack.c.l.b16 %v277
    %v325 = vunpack.c.l.b16 %v278
    %v326 = vunpack.c.l.b16 %v279
    %v327 = vunpack.c.l.b16 %v280
    %v328 = vunpack.c.l.b16 %v281
    %v329 = vunpack.c.l.b16 %v282
    %v330 = vpack.c.b16 %v318, %v317
    %v331 = vpack.c.b16 %v320, %v319
    %v332 = vpack.c.b16 %v322, %v321
    %v333 = vpack.c.b16 %v324, %v323
    %v334 = vpack.c.b16 %v326, %v325
    %v335 = vpack.c.b16 %v328, %v327
    %v336 = vpack.c.b16 %v329, %v329
    %vm337 = vsmask.f32 7424
    %v339 = vshrl.u32 %v330, 16
    %v341 = vshll.u32 %v330, 16
    %v343 = vrot.slane %v341, 1
    %v344 = vor.u32 %v339, %v343
    %v346 = vshll.u32 %v331, 16
    %v348 = vrot.slane %v346, 1
    %v349 = vsel %vm337, %v344, %v348
    %v350 = vshrl.u32 %v331, 16
    %v352 = vor.u32 %v350, %v348
    %v354 = vshll.u32 %v332, 16
    %v356 = vrot.slane %v354, 1
    %v357 = vsel %vm337, %v352, %v356
    %v358 = vshrl.u32 %v332, 16
    %v360 = vor.u32 %v358, %v356
    %v362 = vshll.u32 %v333, 16
    %v364 = vrot.slane %v362, 1
    %v365 = vsel %vm337, %v360, %v364
    %v366 = vshrl.u32 %v333, 16
    %v368 = vor.u32 %v366, %v364
    %v370 = vshll.u32 %v334, 16
    %v372 = vrot.slane %v370, 1
    %v373 = vsel %vm337, %v368, %v372
    %v374 = vshrl.u32 %v334, 16
    %v376 = vor.u32 %v374, %v372
    %v378 = vshll.u32 %v335, 16
    %v380 = vrot.slane %v378, 1
    %v381 = vsel %vm337, %v376, %v380
    %v382 = vshrl.u32 %v335, 16
    %v384 = vor.u32 %v382, %v380
    %v386 = vshll.u32 %v336, 16
    %v388 = vrot.slane %v386, 1
    %v389 = vsel %vm337, %v384, %v388
    %v390 = vshrl.u32 %v336, 16
    %v392 = vor.u32 %v390, %v388
    %v401 = vunpack.c.l.b16 %v283
    %v402 = vunpack.c.l.b16 %v284
    %v403 = vunpack.c.l.b16 %v285
    %v404 = vunpack.c.l.b16 %v286
    %v405 = vunpack.c.l.b16 %v287
    %v406 = vunpack.c.l.b16 %v288
    %v407 = vunpack.c.l.b16 %v289
    %v408 = vunpack.c.l.b16 %v290
    %v409 = vpack.c.b16 %v402, %v401
    %v410 = vpack.c.b16 %v404, %v403
    %v411 = vpack.c.b16 %v406, %v405
    %v412 = vpack.c.b16 %v408, %v407
    %v418 = vsel %vm134, %v349, 0
    %v421 = vsel %vm134, %v357, 0
    %v424 = vsel %vm134, %v365, 0
    %v427 = vsel %vm134, %v373, 0
    %v430 = vsel %vm134, %v381, 0
    %v433 = vsel %vm134, %v389, 0
    %v436 = vsel %vm134, %v392, 0
    %438 = vmatprep.subr.bf16.mxu0 0
    %439 = vmatpush1.bf16.msra.mxu0 %v409
    %440 = vmatprep.subr.bf16.mxu0 0
    %441 = vmatpush1.bf16.msra.mxu0 %v410
    %442 = vmatprep.subr.bf16.mxu0 0
    %443 = vmatpush1.bf16.msra.mxu0 %v411
    %444 = vmatprep.subr.bf16.mxu0 0
    %445 = vmatpush1.bf16.msra.mxu0 %v412
    %446 = vmatprep.subr.bf16.mxu0 0
    %447 = vmatpush1.bf16.msra.mxu0 0
    %448 = vmatprep.subr.bf16.mxu0 0
    %449 = vmatpush1.bf16.msra.mxu0 0
    %450 = vmatprep.subr.bf16.mxu0 0
    %451 = vmatpush1.bf16.msra.mxu0 0
    %452 = vmatprep.subr.bf16.mxu0 0
    %453 = vmatpush1.bf16.msra.mxu0 0
    %454 = vmatprep.subr.bf16.mxu0 0
    %455 = vmatpush1.bf16.msra.mxu0 0
    %456 = vmatprep.subr.bf16.mxu0 0
    %457 = vmatpush1.bf16.msra.mxu0 0
    %458 = vmatprep.subr.bf16.mxu0 0
    %459 = vmatpush1.bf16.msra.mxu0 0
    %460 = vmatprep.subr.bf16.mxu0 0
    %461 = vmatpush1.bf16.msra.mxu0 0
    %462 = vmatprep.subr.bf16.mxu0 0
    %463 = vmatpush1.bf16.msra.mxu0 0
    %464 = vmatprep.subr.bf16.mxu0 0
    %465 = vmatpush1.bf16.msra.mxu0 0
    %466 = vmatprep.subr.bf16.mxu0 0
    %467 = vmatpush1.bf16.msra.mxu0 0
    %468 = vmatprep.subr.bf16.mxu0 0
    %469 = vmatpush1.bf16.msra.mxu0 0
    %470 = vmatprep.mubr.bf16.mxu0 0
    %471 = vmatmul.mubr.bf16.gmra.mrb[0].mxu0 %v418
    %v472 = vpop.f32.mrb[0].mxu0
    %v473 = vadd.f32 0.0, %v472
    %v474 = vpop.f32.mrb[0].mxu0
    %v475 = vpop.f32.mrb[0].mxu0
    %v476 = vadd.f32 0.0, %v475
    %v477 = vpop.f32.mrb[0].mxu0
    %478 = vmatprep.mubr.bf16.mxu0 0
    %479 = vmatmul.mubr.bf16.gmra.mrb[0].mxu0 %v421
    %v480 = vpop.f32.mrb[0].mxu0
    %v481 = vadd.f32 0.0, %v480
    %v482 = vpop.f32.mrb[0].mxu0
    %v483 = vpop.f32.mrb[0].mxu0
    %v484 = vadd.f32 0.0, %v483
    %v485 = vpop.f32.mrb[0].mxu0
    %486 = vmatprep.mubr.bf16.mxu0 0
    %487 = vmatmul.mubr.bf16.gmra.mrb[0].mxu0 %v424
    %v488 = vpop.f32.mrb[0].mxu0
    %v489 = vadd.f32 0.0, %v488
    %v490 = vpop.f32.mrb[0].mxu0
    %v491 = vpop.f32.mrb[0].mxu0
    %v492 = vadd.f32 0.0, %v491
    %v493 = vpop.f32.mrb[0].mxu0
    %494 = vmatprep.mubr.bf16.mxu0 0
    %495 = vmatmul.mubr.bf16.gmra.mrb[0].mxu0 %v427
    %v496 = vpop.f32.mrb[0].mxu0
    %v497 = vadd.f32 0.0, %v496
    %v498 = vpop.f32.mrb[0].mxu0
    %v499 = vpop.f32.mrb[0].mxu0
    %v500 = vadd.f32 0.0, %v499
    %v501 = vpop.f32.mrb[0].mxu0
    %502 = vmatprep.mubr.bf16.mxu0 0
    %503 = vmatmul.mubr.bf16.gmra.mrb[0].mxu0 %v430
    %v504 = vpop.f32.mrb[0].mxu0
    %v505 = vadd.f32 0.0, %v504
    %v506 = vpop.f32.mrb[0].mxu0
    %v507 = vpop.f32.mrb[0].mxu0
    %v508 = vadd.f32 0.0, %v507
    %v509 = vpop.f32.mrb[0].mxu0
    %510 = vmatprep.mubr.bf16.mxu0 0
    %511 = vmatmul.mubr.bf16.gmra.mrb[0].mxu0 %v433
    %v512 = vpop.f32.mrb[0].mxu0
    %v513 = vadd.f32 0.0, %v512
    %v514 = vpop.f32.mrb[0].mxu0
    %v515 = vpop.f32.mrb[0].mxu0
    %v516 = vadd.f32 0.0, %v515
    %v517 = vpop.f32.mrb[0].mxu0
    %518 = vmatprep.mubr.bf16.mxu0 0
    %519 = vmatmul.mubr.bf16.gmra.mrb[0].mxu0 %v436
    %v520 = vpop.f32.mrb[0].mxu0
    %v521 = vadd.f32 0.0, %v520
    %v522 = vpop.f32.mrb[0].mxu0
    %v523 = vpop.f32.mrb[0].mxu0
    %v524 = vpop.f32.mrb[0].mxu0
    %525 = vdwg.mxu0
    %v526 = vadd.f32 %v291, %v473
    %v527 = vadd.f32 %v292, %v476
    %v528 = vadd.f32 %v293, %v481
    %v529 = vadd.f32 %v294, %v484
    %v530 = vadd.f32 %v295, %v489
    %v531 = vadd.f32 %v296, %v492
    %v532 = vadd.f32 %v297, %v497
    %v533 = vadd.f32 %v298, %v500
    %v534 = vadd.f32 %v299, %v505
    %v535 = vadd.f32 %v300, %v508
    %v536 = vadd.f32 %v301, %v513
    %v537 = vadd.f32 %v302, %v516
    %v538 = vadd.f32 %v303, %v521
    %539 = vst [vmem:[#allocation2] sm:$0xff] %v526
    %540 = vst [vmem:[#allocation2 + $0x8] sm:$0xff] %v527
    %541 = vst [vmem:[#allocation2 + $0x10] sm:$0xff] %v528
    %542 = vst [vmem:[#allocation2 + $0x18] sm:$0xff] %v529
    %543 = vst [vmem:[#allocation2 + $0x20] sm:$0xff] %v530
    %544 = vst [vmem:[#allocation2 + $0x28] sm:$0xff] %v531
    %545 = vst [vmem:[#allocation2 + $0x30] sm:$0xff] %v532
    %546 = vst [vmem:[#allocation2 + $0x38] sm:$0xff] %v533
    %547 = vst [vmem:[#allocation2 + $0x40] sm:$0xff] %v534
    %548 = vst [vmem:[#allocation2 + $0x48] sm:$0xff] %v535
    %549 = vst [vmem:[#allocation2 + $0x50] sm:$0xff] %v536
    %550 = vst [vmem:[#allocation2 + $0x58] sm:$0xff] %v537
    %551 = vst [vmem:[#allocation2 + $0x60] sm:$0x7] %v538
    %v552 = vld [vmem:[%s0] sm:$0xe]
    %v553 = vld [vmem:[%s0 + $0x4] sm:$0xf]
    %v554 = vld [vmem:[%s0 + $0x8] sm:$0xf]
    %v555 = vld [vmem:[%s0 + $0xc] sm:$0xf]
    %v556 = vld [vmem:[%s0 + $0x10] sm:$0xf]
    %v557 = vld [vmem:[%s0 + $0x14] sm:$0xf]
    %v558 = vld [vmem:[%s0 + $0x18] sm:$0xf]
    %v559 = vld [vmem:[%s0 + $0x1c] sm:$0xf]
    %v560 = vld [vmem:[%s0 + $0x20] sm:$0xf]
    %v561 = vld [vmem:[%s0 + $0x24] sm:$0xf]
    %v562 = vld [vmem:[%s0 + $0x28] sm:$0xf]
    %v563 = vld [vmem:[%s0 + $0x2c] sm:$0xf]
    %v564 = vld [vmem:[%s0 + $0x30] sm:$0x7]
    %v565 = vld [vmem:[#allocation3 + $0x40] sm:$0xf]
    %v566 = vld [vmem:[#allocation3 + $0x44] sm:$0xf]
    %v567 = vld [vmem:[#allocation3 + $0x48] sm:$0xf]
    %v568 = vld [vmem:[#allocation3 + $0x4c] sm:$0xf]
    %v569 = vld [vmem:[#allocation3 + $0x50] sm:$0xf]
    %v570 = vld [vmem:[#allocation3 + $0x54] sm:$0xf]
    %v571 = vld [vmem:[#allocation3 + $0x58] sm:$0xf]
    %v572 = vld [vmem:[#allocation3 + $0x5c] sm:$0xf]
    %v573 = vld [vmem:[#allocation2] sm:$0xff]
    %v574 = vld [vmem:[#allocation2 + $0x8] sm:$0xff]
    %v575 = vld [vmem:[#allocation2 + $0x10] sm:$0xff]
    %v576 = vld [vmem:[#allocation2 + $0x18] sm:$0xff]
    %v577 = vld [vmem:[#allocation2 + $0x20] sm:$0xff]
    %v578 = vld [vmem:[#allocation2 + $0x28] sm:$0xff]
    %v579 = vld [vmem:[#allocation2 + $0x30] sm:$0xff]
    %v580 = vld [vmem:[#allocation2 + $0x38] sm:$0xff]
    %v581 = vld [vmem:[#allocation2 + $0x40] sm:$0xff]
    %v582 = vld [vmem:[#allocation2 + $0x48] sm:$0xff]
    %v583 = vld [vmem:[#allocation2 + $0x50] sm:$0xff]
    %v584 = vld [vmem:[#allocation2 + $0x58] sm:$0xff]
    %v585 = vld [vmem:[#allocation2 + $0x60] sm:$0x7]
    %v599 = vunpack.c.l.b16 %v552
    %v600 = vunpack.c.l.b16 %v553
    %v601 = vunpack.c.l.b16 %v554
    %v602 = vunpack.c.l.b16 %v555
    %v603 = vunpack.c.l.b16 %v556
    %v604 = vunpack.c.l.b16 %v557
    %v605 = vunpack.c.l.b16 %v558
    %v606 = vunpack.c.l.b16 %v559
    %v607 = vunpack.c.l.b16 %v560
    %v608 = vunpack.c.l.b16 %v561
    %v609 = vunpack.c.l.b16 %v562
    %v610 = vunpack.c.l.b16 %v563
    %v611 = vunpack.c.l.b16 %v564
    %v612 = vpack.c.b16 %v600, %v599
    %v613 = vpack.c.b16 %v602, %v601
    %v614 = vpack.c.b16 %v604, %v603
    %v615 = vpack.c.b16 %v606, %v605
    %v616 = vpack.c.b16 %v608, %v607
    %v617 = vpack.c.b16 %v610, %v609
    %v618 = vpack.c.b16 %v611, %v611
    %vm619 = vcmask 1046528
    %v620 = vrot.slane %v612, 1
    %v621 = vrot.slane %v613, 1
    %v622 = vsel %vm619, %v620, %v621
    %v623 = vrot.slane %v614, 1
    %v624 = vsel %vm619, %v621, %v623
    %v625 = vrot.slane %v615, 1
    %v626 = vsel %vm619, %v623, %v625
    %v627 = vrot.slane %v616, 1
    %v628 = vsel %vm619, %v625, %v627
    %v629 = vrot.slane %v617, 1
    %v630 = vsel %vm619, %v627, %v629
    %v631 = vrot.slane %v618, 1
    %v632 = vsel %vm619, %v629, %v631
    %v641 = vunpack.c.l.b16 %v565
    %v642 = vunpack.c.l.b16 %v566
    %v643 = vunpack.c.l.b16 %v567
    %v644 = vunpack.c.l.b16 %v568
    %v645 = vunpack.c.l.b16 %v569
    %v646 = vunpack.c.l.b16 %v570
    %v647 = vunpack.c.l.b16 %v571
    %v648 = vunpack.c.l.b16 %v572
    %v649 = vpack.c.b16 %v642, %v641
    %v650 = vpack.c.b16 %v644, %v643
    %v651 = vpack.c.b16 %v646, %v645
    %v652 = vpack.c.b16 %v648, %v647
    %v658 = vsel %vm134, %v622, 0
    %v661 = vsel %vm134, %v624, 0
    %v664 = vsel %vm134, %v626, 0
    %v667 = vsel %vm134, %v628, 0
    %v670 = vsel %vm134, %v630, 0
    %v673 = vsel %vm134, %v632, 0
    %v676 = vsel %vm134, %v631, 0
    %678 = vmatprep.subr.bf16.mxu0 0
    %679 = vmatpush1.bf16.msra.mxu0 %v649
    %680 = vmatprep.subr.bf16.mxu0 0
    %681 = vmatpush1.bf16.msra.mxu0 %v650
    %682 = vmatprep.subr.bf16.mxu0 0
    %683 = vmatpush1.bf16.msra.mxu0 %v651
    %684 = vmatprep.subr.bf16.mxu0 0
    %685 = vmatpush1.bf16.msra.mxu0 %v652
    %686 = vmatprep.subr.bf16.mxu0 0
    %687 = vmatpush1.bf16.msra.mxu0 0
    %688 = vmatprep.subr.bf16.mxu0 0
    %689 = vmatpush1.bf16.msra.mxu0 0
    %690 = vmatprep.subr.bf16.mxu0 0
    %691 = vmatpush1.bf16.msra.mxu0 0
    %692 = vmatprep.subr.bf16.mxu0 0
    %693 = vmatpush1.bf16.msra.mxu0 0
    %694 = vmatprep.subr.bf16.mxu0 0
    %695 = vmatpush1.bf16.msra.mxu0 0
    %696 = vmatprep.subr.bf16.mxu0 0
    %697 = vmatpush1.bf16.msra.mxu0 0
    %698 = vmatprep.subr.bf16.mxu0 0
    %699 = vmatpush1.bf16.msra.mxu0 0
    %700 = vmatprep.subr.bf16.mxu0 0
    %701 = vmatpush1.bf16.msra.mxu0 0
    %702 = vmatprep.subr.bf16.mxu0 0
    %703 = vmatpush1.bf16.msra.mxu0 0
    %704 = vmatprep.subr.bf16.mxu0 0
    %705 = vmatpush1.bf16.msra.mxu0 0
    %706 = vmatprep.subr.bf16.mxu0 0
    %707 = vmatpush1.bf16.msra.mxu0 0
    %708 = vmatprep.subr.bf16.mxu0 0
    %709 = vmatpush1.bf16.msra.mxu0 0
    %710 = vmatprep.mubr.bf16.mxu0 0
    %711 = vmatmul.mubr.bf16.gmra.mrb[0].mxu0 %v658
    %v712 = vpop.f32.mrb[0].mxu0
    %v713 = vadd.f32 0.0, %v712
    %v714 = vpop.f32.mrb[0].mxu0
    %v715 = vpop.f32.mrb[0].mxu0
    %v716 = vadd.f32 0.0, %v715
    %v717 = vpop.f32.mrb[0].mxu0
    %718 = vmatprep.mubr.bf16.mxu0 0
    %719 = vmatmul.mubr.bf16.gmra.mrb[0].mxu0 %v661
    %v720 = vpop.f32.mrb[0].mxu0
    %v721 = vadd.f32 0.0, %v720
    %v722 = vpop.f32.mrb[0].mxu0
    %v723 = vpop.f32.mrb[0].mxu0
    %v724 = vadd.f32 0.0, %v723
    %v725 = vpop.f32.mrb[0].mxu0
    %726 = vmatprep.mubr.bf16.mxu0 0
    %727 = vmatmul.mubr.bf16.gmra.mrb[0].mxu0 %v664
    %v728 = vpop.f32.mrb[0].mxu0
    %v729 = vadd.f32 0.0, %v728
    %v730 = vpop.f32.mrb[0].mxu0
    %v731 = vpop.f32.mrb[0].mxu0
    %v732 = vadd.f32 0.0, %v731
    %v733 = vpop.f32.mrb[0].mxu0
    %734 = vmatprep.mubr.bf16.mxu0 0
    %735 = vmatmul.mubr.bf16.gmra.mrb[0].mxu0 %v667
    %v736 = vpop.f32.mrb[0].mxu0
    %v737 = vadd.f32 0.0, %v736
    %v738 = vpop.f32.mrb[0].mxu0
    %v739 = vpop.f32.mrb[0].mxu0
    %v740 = vadd.f32 0.0, %v739
    %v741 = vpop.f32.mrb[0].mxu0
    %742 = vmatprep.mubr.bf16.mxu0 0
    %743 = vmatmul.mubr.bf16.gmra.mrb[0].mxu0 %v670
    %v744 = vpop.f32.mrb[0].mxu0
    %v745 = vadd.f32 0.0, %v744
    %v746 = vpop.f32.mrb[0].mxu0
    %v747 = vpop.f32.mrb[0].mxu0
    %v748 = vadd.f32 0.0, %v747
    %v749 = vpop.f32.mrb[0].mxu0
    %750 = vmatprep.mubr.bf16.mxu0 0
    %751 = vmatmul.mubr.bf16.gmra.mrb[0].mxu0 %v673
    %v752 = vpop.f32.mrb[0].mxu0
    %v753 = vadd.f32 0.0, %v752
    %v754 = vpop.f32.mrb[0].mxu0
    %v755 = vpop.f32.mrb[0].mxu0
    %v756 = vadd.f32 0.0, %v755
    %v757 = vpop.f32.mrb[0].mxu0
    %758 = vmatprep.mubr.bf16.mxu0 0
    %759 = vmatmul.mubr.bf16.gmra.mrb[0].mxu0 %v676
    %v760 = vpop.f32.mrb[0].mxu0
    %v761 = vadd.f32 0.0, %v760
    %v762 = vpop.f32.mrb[0].mxu0
    %v763 = vpop.f32.mrb[0].mxu0
    %v764 = vpop.f32.mrb[0].mxu0
    %765 = vdwg.mxu0
    %v766 = vadd.f32 %v573, %v713
    %v767 = vadd.f32 %v574, %v716
    %v768 = vadd.f32 %v575, %v721
    %v769 = vadd.f32 %v576, %v724
    %v770 = vadd.f32 %v577, %v729
    %v771 = vadd.f32 %v578, %v732
    %v772 = vadd.f32 %v579, %v737
    %v773 = vadd.f32 %v580, %v740
    %v774 = vadd.f32 %v581, %v745
    %v775 = vadd.f32 %v582, %v748
    %v776 = vadd.f32 %v583, %v753
    %v777 = vadd.f32 %v584, %v756
    %v778 = vadd.f32 %v585, %v761
    %779 = vst [vmem:[#allocation2] sm:$0xff] %v766
    %780 = vst [vmem:[#allocation2 + $0x8] sm:$0xff] %v767
    %781 = vst [vmem:[#allocation2 + $0x10] sm:$0xff] %v768
    %782 = vst [vmem:[#allocation2 + $0x18] sm:$0xff] %v769
    %783 = vst [vmem:[#allocation2 + $0x20] sm:$0xff] %v770
    %784 = vst [vmem:[#allocation2 + $0x28] sm:$0xff] %v771
    %785 = vst [vmem:[#allocation2 + $0x30] sm:$0xff] %v772
    %786 = vst [vmem:[#allocation2 + $0x38] sm:$0xff] %v773
    %787 = vst [vmem:[#allocation2 + $0x40] sm:$0xff] %v774
    %788 = vst [vmem:[#allocation2 + $0x48] sm:$0xff] %v775
    %789 = vst [vmem:[#allocation2 + $0x50] sm:$0xff] %v776
    %790 = vst [vmem:[#allocation2 + $0x58] sm:$0xff] %v777
    %791 = vst [vmem:[#allocation2 + $0x60] sm:$0x7] %v778
    %v792 = vld [vmem:[%s0 + $0x4] sm:$0xe]
    %v793 = vld [vmem:[%s0 + $0x8] sm:$0xf]
    %v794 = vld [vmem:[%s0 + $0xc] sm:$0xf]
    %v795 = vld [vmem:[%s0 + $0x10] sm:$0xf]
    %v796 = vld [vmem:[%s0 + $0x14] sm:$0xf]
    %v797 = vld [vmem:[%s0 + $0x18] sm:$0xf]
    %v798 = vld [vmem:[%s0 + $0x1c] sm:$0xf]
    %v799 = vld [vmem:[%s0 + $0x20] sm:$0xf]
    %v800 = vld [vmem:[%s0 + $0x24] sm:$0xf]
    %v801 = vld [vmem:[%s0 + $0x28] sm:$0xf]
    %v802 = vld [vmem:[%s0 + $0x2c] sm:$0xf]
    %v803 = vld [vmem:[%s0 + $0x30] sm:$0xf]
    %v804 = vld [vmem:[%s0 + $0x34] sm:$0x7]
    %v805 = vld [vmem:[#allocation3 + $0x60] sm:$0xf]
    %v806 = vld [vmem:[#allocation3 + $0x64] sm:$0xf]
    %v807 = vld [vmem:[#allocation3 + $0x68] sm:$0xf]
    %v808 = vld [vmem:[#allocation3 + $0x6c] sm:$0xf]
    %v809 = vld [vmem:[#allocation3 + $0x70] sm:$0xf]
    %v810 = vld [vmem:[#allocation3 + $0x74] sm:$0xf]
    %v811 = vld [vmem:[#allocation3 + $0x78] sm:$0xf]
    %v812 = vld [vmem:[#allocation3 + $0x7c] sm:$0xf]
    %v813 = vld [vmem:[#allocation2] sm:$0xff]
    %v814 = vld [vmem:[#allocation2 + $0x8] sm:$0xff]
    %v815 = vld [vmem:[#allocation2 + $0x10] sm:$0xff]
    %v816 = vld [vmem:[#allocation2 + $0x18] sm:$0xff]
    %v817 = vld [vmem:[#allocation2 + $0x20] sm:$0xff]
    %v818 = vld [vmem:[#allocation2 + $0x28] sm:$0xff]
    %v819 = vld [vmem:[#allocation2 + $0x30] sm:$0xff]
    %v820 = vld [vmem:[#allocation2 + $0x38] sm:$0xff]
    %v821 = vld [vmem:[#allocation2 + $0x40] sm:$0xff]
    %v822 = vld [vmem:[#allocation2 + $0x48] sm:$0xff]
    %v823 = vld [vmem:[#allocation2 + $0x50] sm:$0xff]
    %v824 = vld [vmem:[#allocation2 + $0x58] sm:$0xff]
    %v825 = vld [vmem:[#allocation2 + $0x60] sm:$0x7]
    %v839 = vunpack.c.l.b16 %v792
    %v840 = vunpack.c.l.b16 %v793
    %v841 = vunpack.c.l.b16 %v794
    %v842 = vunpack.c.l.b16 %v795
    %v843 = vunpack.c.l.b16 %v796
    %v844 = vunpack.c.l.b16 %v797
    %v845 = vunpack.c.l.b16 %v798
    %v846 = vunpack.c.l.b16 %v799
    %v847 = vunpack.c.l.b16 %v800
    %v848 = vunpack.c.l.b16 %v801
    %v849 = vunpack.c.l.b16 %v802
    %v850 = vunpack.c.l.b16 %v803
    %v851 = vunpack.c.l.b16 %v804
    %v852 = vpack.c.b16 %v840, %v839
    %v853 = vpack.c.b16 %v842, %v841
    %v854 = vpack.c.b16 %v844, %v843
    %v855 = vpack.c.b16 %v846, %v845
    %v856 = vpack.c.b16 %v848, %v847
    %v857 = vpack.c.b16 %v850, %v849
    %v858 = vpack.c.b16 %v851, %v851
    %vm859 = vsmask.f32 6400
    %v861 = vshrl.u32 %v852, 16
    %v863 = vrot.slane %v861, 1
    %v864 = vshll.u32 %v852, 16
    %v866 = vrot.slane %v864, 2
    %v867 = vor.u32 %v863, %v866
    %v869 = vshrl.u32 %v853, 16
    %v871 = vrot.slane %v869, 1
    %v872 = vshll.u32 %v853, 16
    %v874 = vrot.slane %v872, 2
    %v875 = vor.u32 %v871, %v874
    %v876 = vsel %vm859, %v867, %v875
    %v878 = vshrl.u32 %v854, 16
    %v880 = vrot.slane %v878, 1
    %v881 = vshll.u32 %v854, 16
    %v883 = vrot.slane %v881, 2
    %v884 = vor.u32 %v880, %v883
    %v885 = vsel %vm859, %v875, %v884
    %v887 = vshrl.u32 %v855, 16
    %v889 = vrot.slane %v887, 1
    %v890 = vshll.u32 %v855, 16
    %v892 = vrot.slane %v890, 2
    %v893 = vor.u32 %v889, %v892
    %v894 = vsel %vm859, %v884, %v893
    %v896 = vshrl.u32 %v856, 16
    %v898 = vrot.slane %v896, 1
    %v899 = vshll.u32 %v856, 16
    %v901 = vrot.slane %v899, 2
    %v902 = vor.u32 %v898, %v901
    %v903 = vsel %vm859, %v893, %v902
    %v905 = vshrl.u32 %v857, 16
    %v907 = vrot.slane %v905, 1
    %v908 = vshll.u32 %v857, 16
    %v910 = vrot.slane %v908, 2
    %v911 = vor.u32 %v907, %v910
    %v912 = vsel %vm859, %v902, %v911
    %v914 = vshrl.u32 %v858, 16
    %v916 = vrot.slane %v914, 1
    %v917 = vshll.u32 %v858, 16
    %v919 = vrot.slane %v917, 2
    %v920 = vor.u32 %v916, %v919
    %v921 = vsel %vm859, %v911, %v920
    %v930 = vunpack.c.l.b16 %v805
    %v931 = vunpack.c.l.b16 %v806
    %v932 = vunpack.c.l.b16 %v807
    %v933 = vunpack.c.l.b16 %v808
    %v934 = vunpack.c.l.b16 %v809
    %v935 = vunpack.c.l.b16 %v810
    %v936 = vunpack.c.l.b16 %v811
    %v937 = vunpack.c.l.b16 %v812
    %v938 = vpack.c.b16 %v931, %v930
    %v939 = vpack.c.b16 %v933, %v932
    %v940 = vpack.c.b16 %v935, %v934
    %v941 = vpack.c.b16 %v937, %v936
    %v947 = vsel %vm134, %v876, 0
    %v950 = vsel %vm134, %v885, 0
    %v953 = vsel %vm134, %v894, 0
    %v956 = vsel %vm134, %v903, 0
    %v959 = vsel %vm134, %v912, 0
    %v962 = vsel %vm134, %v921, 0
    %v965 = vsel %vm134, %v920, 0
    %967 = vmatprep.subr.bf16.mxu0 0
    %968 = vmatpush1.bf16.msra.mxu0 %v938
    %969 = vmatprep.subr.bf16.mxu0 0
    %970 = vmatpush1.bf16.msra.mxu0 %v939
    %971 = vmatprep.subr.bf16.mxu0 0
    %972 = vmatpush1.bf16.msra.mxu0 %v940
    %973 = vmatprep.subr.bf16.mxu0 0
    %974 = vmatpush1.bf16.msra.mxu0 %v941
    %975 = vmatprep.subr.bf16.mxu0 0
    %976 = vmatpush1.bf16.msra.mxu0 0
    %977 = vmatprep.subr.bf16.mxu0 0
    %978 = vmatpush1.bf16.msra.mxu0 0
    %979 = vmatprep.subr.bf16.mxu0 0
    %980 = vmatpush1.bf16.msra.mxu0 0
    %981 = vmatprep.subr.bf16.mxu0 0
    %982 = vmatpush1.bf16.msra.mxu0 0
    %983 = vmatprep.subr.bf16.mxu0 0
    %984 = vmatpush1.bf16.msra.mxu0 0
    %985 = vmatprep.subr.bf16.mxu0 0
    %986 = vmatpush1.bf16.msra.mxu0 0
    %987 = vmatprep.subr.bf16.mxu0 0
    %988 = vmatpush1.bf16.msra.mxu0 0
    %989 = vmatprep.subr.bf16.mxu0 0
    %990 = vmatpush1.bf16.msra.mxu0 0
    %991 = vmatprep.subr.bf16.mxu0 0
    %992 = vmatpush1.bf16.msra.mxu0 0
    %993 = vmatprep.subr.bf16.mxu0 0
    %994 = vmatpush1.bf16.msra.mxu0 0
    %995 = vmatprep.subr.bf16.mxu0 0
    %996 = vmatpush1.bf16.msra.mxu0 0
    %997 = vmatprep.subr.bf16.mxu0 0
    %998 = vmatpush1.bf16.msra.mxu0 0
    %999 = vmatprep.mubr.bf16.mxu0 0
    %1000 = vmatmul.mubr.bf16.gmra.mrb[0].mxu0 %v947
    %v1001 = vpop.f32.mrb[0].mxu0
    %v1002 = vadd.f32 0.0, %v1001
    %v1003 = vpop.f32.mrb[0].mxu0
    %v1004 = vpop.f32.mrb[0].mxu0
    %v1005 = vadd.f32 0.0, %v1004
    %v1006 = vpop.f32.mrb[0].mxu0
    %1007 = vmatprep.mubr.bf16.mxu0 0
    %1008 = vmatmul.mubr.bf16.gmra.mrb[0].mxu0 %v950
    %v1009 = vpop.f32.mrb[0].mxu0
    %v1010 = vadd.f32 0.0, %v1009
    %v1011 = vpop.f32.mrb[0].mxu0
    %v1012 = vpop.f32.mrb[0].mxu0
    %v1013 = vadd.f32 0.0, %v1012
    %v1014 = vpop.f32.mrb[0].mxu0
    %1015 = vmatprep.mubr.bf16.mxu0 0
    %1016 = vmatmul.mubr.bf16.gmra.mrb[0].mxu0 %v953
    %v1017 = vpop.f32.mrb[0].mxu0
    %v1018 = vadd.f32 0.0, %v1017
    %v1019 = vpop.f32.mrb[0].mxu0
    %v1020 = vpop.f32.mrb[0].mxu0
    %v1021 = vadd.f32 0.0, %v1020
    %v1022 = vpop.f32.mrb[0].mxu0
    %1023 = vmatprep.mubr.bf16.mxu0 0
    %1024 = vmatmul.mubr.bf16.gmra.mrb[0].mxu0 %v956
    %v1025 = vpop.f32.mrb[0].mxu0
    %v1026 = vadd.f32 0.0, %v1025
    %v1027 = vpop.f32.mrb[0].mxu0
    %v1028 = vpop.f32.mrb[0].mxu0
    %v1029 = vadd.f32 0.0, %v1028
    %v1030 = vpop.f32.mrb[0].mxu0
    %1031 = vmatprep.mubr.bf16.mxu0 0
    %1032 = vmatmul.mubr.bf16.gmra.mrb[0].mxu0 %v959
    %v1033 = vpop.f32.mrb[0].mxu0
    %v1034 = vadd.f32 0.0, %v1033
    %v1035 = vpop.f32.mrb[0].mxu0
    %v1036 = vpop.f32.mrb[0].mxu0
    %v1037 = vadd.f32 0.0, %v1036
    %v1038 = vpop.f32.mrb[0].mxu0
    %1039 = vmatprep.mubr.bf16.mxu0 0
    %1040 = vmatmul.mubr.bf16.gmra.mrb[0].mxu0 %v962
    %v1041 = vpop.f32.mrb[0].mxu0
    %v1042 = vadd.f32 0.0, %v1041
    %v1043 = vpop.f32.mrb[0].mxu0
    %v1044 = vpop.f32.mrb[0].mxu0
    %v1045 = vadd.f32 0.0, %v1044
    %v1046 = vpop.f32.mrb[0].mxu0
    %1047 = vmatprep.mubr.bf16.mxu0 0
    %1048 = vmatmul.mubr.bf16.gmra.mrb[0].mxu0 %v965
    %v1049 = vpop.f32.mrb[0].mxu0
    %v1050 = vadd.f32 0.0, %v1049
    %v1051 = vpop.f32.mrb[0].mxu0
    %v1052 = vpop.f32.mrb[0].mxu0
    %v1053 = vpop.f32.mrb[0].mxu0
    %1054 = vdwg.mxu0
    %v1055 = vadd.f32 %v813, %v1002
    %v1056 = vadd.f32 %v814, %v1005
    %v1057 = vadd.f32 %v815, %v1010
    %v1058 = vadd.f32 %v816, %v1013
    %v1059 = vadd.f32 %v817, %v1018
    %v1060 = vadd.f32 %v818, %v1021
    %v1061 = vadd.f32 %v819, %v1026
    %v1062 = vadd.f32 %v820, %v1029
    %v1063 = vadd.f32 %v821, %v1034
    %v1064 = vadd.f32 %v822, %v1037
    %v1065 = vadd.f32 %v823, %v1042
    %v1066 = vadd.f32 %v824, %v1045
    %v1067 = vadd.f32 %v825, %v1050
    %1068 = vst [vmem:[#allocation2] sm:$0xff] %v1055
    %1069 = vst [vmem:[#allocation2 + $0x8] sm:$0xff] %v1056
    %1070 = vst [vmem:[#allocation2 + $0x10] sm:$0xff] %v1057
    %1071 = vst [vmem:[#allocation2 + $0x18] sm:$0xff] %v1058
    %1072 = vst [vmem:[#allocation2 + $0x20] sm:$0xff] %v1059
    %1073 = vst [vmem:[#allocation2 + $0x28] sm:$0xff] %v1060
    %1074 = vst [vmem:[#allocation2 + $0x30] sm:$0xff] %v1061
    %1075 = vst [vmem:[#allocation2 + $0x38] sm:$0xff] %v1062
    %1076 = vst [vmem:[#allocation2 + $0x40] sm:$0xff] %v1063
    %1077 = vst [vmem:[#allocation2 + $0x48] sm:$0xff] %v1064
    %1078 = vst [vmem:[#allocation2 + $0x50] sm:$0xff] %v1065
    %1079 = vst [vmem:[#allocation2 + $0x58] sm:$0xff] %v1066
    %1080 = vst [vmem:[#allocation2 + $0x60] sm:$0x7] %v1067
    %v1081 = vld [vmem:[%s0 + $0x4] sm:$0xc]
    %v1082 = vld [vmem:[%s0 + $0x8] sm:$0xf]
    %v1083 = vld [vmem:[%s0 + $0xc] sm:$0xf]
    %v1084 = vld [vmem:[%s0 + $0x10] sm:$0xf]
    %v1085 = vld [vmem:[%s0 + $0x14] sm:$0xf]
    %v1086 = vld [vmem:[%s0 + $0x18] sm:$0xf]
    %v1087 = vld [vmem:[%s0 + $0x1c] sm:$0xf]
    %v1088 = vld [vmem:[%s0 + $0x20] sm:$0xf]
    %v1089 = vld [vmem:[%s0 + $0x24] sm:$0xf]
    %v1090 = vld [vmem:[%s0 + $0x28] sm:$0xf]
    %v1091 = vld [vmem:[%s0 + $0x2c] sm:$0xf]
    %v1092 = vld [vmem:[%s0 + $0x30] sm:$0xf]
    %v1093 = vld [vmem:[%s0 + $0x34] sm:$0xf]
    %v1094 = vld [vmem:[#allocation3 + $0x80] sm:$0xf]
    %v1095 = vld [vmem:[#allocation3 + $0x84] sm:$0xf]
    %v1096 = vld [vmem:[#allocation3 + $0x88] sm:$0xf]
    %v1097 = vld [vmem:[#allocation3 + $0x8c] sm:$0xf]
    %v1098 = vld [vmem:[#allocation3 + $0x90] sm:$0xf]
    %v1099 = vld [vmem:[#allocation3 + $0x94] sm:$0xf]
    %v1100 = vld [vmem:[#allocation3 + $0x98] sm:$0xf]
    %v1101 = vld [vmem:[#allocation3 + $0x9c] sm:$0xf]
    %v1102 = vld [vmem:[#allocation2] sm:$0xff]
    %v1103 = vld [vmem:[#allocation2 + $0x8] sm:$0xff]
    %v1104 = vld [vmem:[#allocation2 + $0x10] sm:$0xff]
    %v1105 = vld [vmem:[#allocation2 + $0x18] sm:$0xff]
    %v1106 = vld [vmem:[#allocation2 + $0x20] sm:$0xff]
    %v1107 = vld [vmem:[#allocation2 + $0x28] sm:$0xff]
    %v1108 = vld [vmem:[#allocation2 + $0x30] sm:$0xff]
    %v1109 = vld [vmem:[#allocation2 + $0x38] sm:$0xff]
    %v1110 = vld [vmem:[#allocation2 + $0x40] sm:$0xff]
    %v1111 = vld [vmem:[#allocation2 + $0x48] sm:$0xff]
    %v1112 = vld [vmem:[#allocation2 + $0x50] sm:$0xff]
    %v1113 = vld [vmem:[#allocation2 + $0x58] sm:$0xff]
    %v1114 = vld [vmem:[#allocation2 + $0x60] sm:$0x7]
    %v1128 = vunpack.c.l.b16 %v1081
    %v1129 = vunpack.c.l.b16 %v1082
    %v1130 = vunpack.c.l.b16 %v1083
    %v1131 = vunpack.c.l.b16 %v1084
    %v1132 = vunpack.c.l.b16 %v1085
    %v1133 = vunpack.c.l.b16 %v1086
    %v1134 = vunpack.c.l.b16 %v1087
    %v1135 = vunpack.c.l.b16 %v1088
    %v1136 = vunpack.c.l.b16 %v1089
    %v1137 = vunpack.c.l.b16 %v1090
    %v1138 = vunpack.c.l.b16 %v1091
    %v1139 = vunpack.c.l.b16 %v1092
    %v1140 = vunpack.c.l.b16 %v1093
    %v1141 = vpack.c.b16 %v1129, %v1128
    %v1142 = vpack.c.b16 %v1131, %v1130
    %v1143 = vpack.c.b16 %v1133, %v1132
    %v1144 = vpack.c.b16 %v1135, %v1134
    %v1145 = vpack.c.b16 %v1137, %v1136
    %v1146 = vpack.c.b16 %v1139, %v1138
    %v1147 = vpack.c.b16 %v1140, %v1140
    %vm1148 = vcmask 1045504
    %v1149 = vrot.slane %v1141, 2
    %v1150 = vrot.slane %v1142, 2
    %v1151 = vsel %vm1148, %v1149, %v1150
    %v1152 = vrot.slane %v1143, 2
    %v1153 = vsel %vm1148, %v1150, %v1152
    %v1154 = vrot.slane %v1144, 2
    %v1155 = vsel %vm1148, %v1152, %v1154
    %v1156 = vrot.slane %v1145, 2
    %v1157 = vsel %vm1148, %v1154, %v1156
    %v1158 = vrot.slane %v1146, 2
    %v1159 = vsel %vm1148, %v1156, %v1158
    %v1160 = vrot.slane %v1147, 2
    %v1161 = vsel %vm1148, %v1158, %v1160
    %v1170 = vunpack.c.l.b16 %v1094
    %v1171 = vunpack.c.l.b16 %v1095
    %v1172 = vunpack.c.l.b16 %v1096
    %v1173 = vunpack.c.l.b16 %v1097
    %v1174 = vunpack.c.l.b16 %v1098
    %v1175 = vunpack.c.l.b16 %v1099
    %v1176 = vunpack.c.l.b16 %v1100
    %v1177 = vunpack.c.l.b16 %v1101
    %v1178 = vpack.c.b16 %v1171, %v1170
    %v1179 = vpack.c.b16 %v1173, %v1172
    %v1180 = vpack.c.b16 %v1175, %v1174
    %v1181 = vpack.c.b16 %v1177, %v1176
    %v1187 = vsel %vm134, %v1151, 0
    %v1190 = vsel %vm134, %v1153, 0
    %v1193 = vsel %vm134, %v1155, 0
    %v1196 = vsel %vm134, %v1157, 0
    %v1199 = vsel %vm134, %v1159, 0
    %v1202 = vsel %vm134, %v1161, 0
    %v1205 = vsel %vm134, %v1160, 0
    %1207 = vmatprep.subr.bf16.mxu0 0
    %1208 = vmatpush1.bf16.msra.mxu0 %v1178
    %1209 = vmatprep.subr.bf16.mxu0 0
    %1210 = vmatpush1.bf16.msra.mxu0 %v1179
    %1211 = vmatprep.subr.bf16.mxu0 0
    %1212 = vmatpush1.bf16.msra.mxu0 %v1180
    %1213 = vmatprep.subr.bf16.mxu0 0
    %1214 = vmatpush1.bf16.msra.mxu0 %v1181
    %1215 = vmatprep.subr.bf16.mxu0 0
    %1216 = vmatpush1.bf16.msra.mxu0 0
    %1217 = vmatprep.subr.bf16.mxu0 0
    %1218 = vmatpush1.bf16.msra.mxu0 0
    %1219 = vmatprep.subr.bf16.mxu0 0
    %1220 = vmatpush1.bf16.msra.mxu0 0
    %1221 = vmatprep.subr.bf16.mxu0 0
    %1222 = vmatpush1.bf16.msra.mxu0 0
    %1223 = vmatprep.subr.bf16.mxu0 0
    %1224 = vmatpush1.bf16.msra.mxu0 0
    %1225 = vmatprep.subr.bf16.mxu0 0
    %1226 = vmatpush1.bf16.msra.mxu0 0
    %1227 = vmatprep.subr.bf16.mxu0 0
    %1228 = vmatpush1.bf16.msra.mxu0 0
    %1229 = vmatprep.subr.bf16.mxu0 0
    %1230 = vmatpush1.bf16.msra.mxu0 0
    %1231 = vmatprep.subr.bf16.mxu0 0
    %1232 = vmatpush1.bf16.msra.mxu0 0
    %1233 = vmatprep.subr.bf16.mxu0 0
    %1234 = vmatpush1.bf16.msra.mxu0 0
    %1235 = vmatprep.subr.bf16.mxu0 0
    %1236 = vmatpush1.bf16.msra.mxu0 0
    %1237 = vmatprep.subr.bf16.mxu0 0
    %1238 = vmatpush1.bf16.msra.mxu0 0
    %1239 = vmatprep.mubr.bf16.mxu0 0
    %1240 = vmatmul.mubr.bf16.gmra.mrb[0].mxu0 %v1187
    %v1241 = vpop.f32.mrb[0].mxu0
    %v1242 = vadd.f32 0.0, %v1241
    %v1243 = vpop.f32.mrb[0].mxu0
    %v1244 = vpop.f32.mrb[0].mxu0
    %v1245 = vadd.f32 0.0, %v1244
    %v1246 = vpop.f32.mrb[0].mxu0
    %1247 = vmatprep.mubr.bf16.mxu0 0
    %1248 = vmatmul.mubr.bf16.gmra.mrb[0].mxu0 %v1190
    %v1249 = vpop.f32.mrb[0].mxu0
    %v1250 = vadd.f32 0.0, %v1249
    %v1251 = vpop.f32.mrb[0].mxu0
    %v1252 = vpop.f32.mrb[0].mxu0
    %v1253 = vadd.f32 0.0, %v1252
    %v1254 = vpop.f32.mrb[0].mxu0
    %1255 = vmatprep.mubr.bf16.mxu0 0
    %1256 = vmatmul.mubr.bf16.gmra.mrb[0].mxu0 %v1193
    %v1257 = vpop.f32.mrb[0].mxu0
    %v1258 = vadd.f32 0.0, %v1257
    %v1259 = vpop.f32.mrb[0].mxu0
    %v1260 = vpop.f32.mrb[0].mxu0
    %v1261 = vadd.f32 0.0, %v1260
    %v1262 = vpop.f32.mrb[0].mxu0
    %1263 = vmatprep.mubr.bf16.mxu0 0
    %1264 = vmatmul.mubr.bf16.gmra.mrb[0].mxu0 %v1196
    %v1265 = vpop.f32.mrb[0].mxu0
    %v1266 = vadd.f32 0.0, %v1265
    %v1267 = vpop.f32.mrb[0].mxu0
    %v1268 = vpop.f32.mrb[0].mxu0
    %v1269 = vadd.f32 0.0, %v1268
    %v1270 = vpop.f32.mrb[0].mxu0
    %1271 = vmatprep.mubr.bf16.mxu0 0
    %1272 = vmatmul.mubr.bf16.gmra.mrb[0].mxu0 %v1199
    %v1273 = vpop.f32.mrb[0].mxu0
    %v1274 = vadd.f32 0.0, %v1273
    %v1275 = vpop.f32.mrb[0].mxu0
    %v1276 = vpop.f32.mrb[0].mxu0
    %v1277 = vadd.f32 0.0, %v1276
    %v1278 = vpop.f32.mrb[0].mxu0
    %1279 = vmatprep.mubr.bf16.mxu0 0
    %1280 = vmatmul.mubr.bf16.gmra.mrb[0].mxu0 %v1202
    %v1281 = vpop.f32.mrb[0].mxu0
    %v1282 = vadd.f32 0.0, %v1281
    %v1283 = vpop.f32.mrb[0].mxu0
    %v1284 = vpop.f32.mrb[0].mxu0
    %v1285 = vadd.f32 0.0, %v1284
    %v1286 = vpop.f32.mrb[0].mxu0
    %1287 = vmatprep.mubr.bf16.mxu0 0
    %1288 = vmatmul.mubr.bf16.gmra.mrb[0].mxu0 %v1205
    %v1289 = vpop.f32.mrb[0].mxu0
    %v1290 = vadd.f32 0.0, %v1289
    %v1291 = vpop.f32.mrb[0].mxu0
    %v1292 = vpop.f32.mrb[0].mxu0
    %v1293 = vpop.f32.mrb[0].mxu0
    %1294 = vdwg.mxu0
    %v1295 = vadd.f32 %v1102, %v1242
    %v1296 = vadd.f32 %v1103, %v1245
    %v1297 = vadd.f32 %v1104, %v1250
    %v1298 = vadd.f32 %v1105, %v1253
    %v1299 = vadd.f32 %v1106, %v1258
    %v1300 = vadd.f32 %v1107, %v1261
    %v1301 = vadd.f32 %v1108, %v1266
    %v1302 = vadd.f32 %v1109, %v1269
    %v1303 = vadd.f32 %v1110, %v1274
    %v1304 = vadd.f32 %v1111, %v1277
    %v1305 = vadd.f32 %v1112, %v1282
    %v1306 = vadd.f32 %v1113, %v1285
    %v1307 = vadd.f32 %v1114, %v1290
    %1308 = vst [vmem:[#allocation2] sm:$0xff] %v1295
    %1309 = vst [vmem:[#allocation2 + $0x8] sm:$0xff] %v1296
    %1310 = vst [vmem:[#allocation2 + $0x10] sm:$0xff] %v1297
    %1311 = vst [vmem:[#allocation2 + $0x18] sm:$0xff] %v1298
    %1312 = vst [vmem:[#allocation2 + $0x20] sm:$0xff] %v1299
    %1313 = vst [vmem:[#allocation2 + $0x28] sm:$0xff] %v1300
    %1314 = vst [vmem:[#allocation2 + $0x30] sm:$0xff] %v1301
    %1315 = vst [vmem:[#allocation2 + $0x38] sm:$0xff] %v1302
    %1316 = vst [vmem:[#allocation2 + $0x40] sm:$0xff] %v1303
    %1317 = vst [vmem:[#allocation2 + $0x48] sm:$0xff] %v1304
    %1318 = vst [vmem:[#allocation2 + $0x50] sm:$0xff] %v1305
    %1319 = vst [vmem:[#allocation2 + $0x58] sm:$0xff] %v1306
    %1320 = vst [vmem:[#allocation2 + $0x60] sm:$0x7] %v1307
    %v1321 = vld [vmem:[%s0 + $0x4] sm:$0xc]
    %v1322 = vld [vmem:[%s0 + $0x8] sm:$0xf]
    %v1323 = vld [vmem:[%s0 + $0xc] sm:$0xf]
    %v1324 = vld [vmem:[%s0 + $0x10] sm:$0xf]
    %v1325 = vld [vmem:[%s0 + $0x14] sm:$0xf]
    %v1326 = vld [vmem:[%s0 + $0x18] sm:$0xf]
    %v1327 = vld [vmem:[%s0 + $0x1c] sm:$0xf]
    %v1328 = vld [vmem:[%s0 + $0x20] sm:$0xf]
    %v1329 = vld [vmem:[%s0 + $0x24] sm:$0xf]
    %v1330 = vld [vmem:[%s0 + $0x28] sm:$0xf]
    %v1331 = vld [vmem:[%s0 + $0x2c] sm:$0xf]
    %v1332 = vld [vmem:[%s0 + $0x30] sm:$0xf]
    %v1333 = vld [vmem:[%s0 + $0x34] sm:$0xf]
    %v1334 = vld [vmem:[#allocation3 + $0xa0] sm:$0xf]
    %v1335 = vld [vmem:[#allocation3 + $0xa4] sm:$0xf]
    %v1336 = vld [vmem:[#allocation3 + $0xa8] sm:$0xf]
    %v1337 = vld [vmem:[#allocation3 + $0xac] sm:$0xf]
    %v1338 = vld [vmem:[#allocation3 + $0xb0] sm:$0xf]
    %v1339 = vld [vmem:[#allocation3 + $0xb4] sm:$0xf]
    %v1340 = vld [vmem:[#allocation3 + $0xb8] sm:$0xf]
    %v1341 = vld [vmem:[#allocation3 + $0xbc] sm:$0xf]
    %v1342 = vld [vmem:[#allocation2] sm:$0xff]
    %v1343 = vld [vmem:[#allocation2 + $0x8] sm:$0xff]
    %v1344 = vld [vmem:[#allocation2 + $0x10] sm:$0xff]
    %v1345 = vld [vmem:[#allocation2 + $0x18] sm:$0xff]
    %v1346 = vld [vmem:[#allocation2 + $0x20] sm:$0xff]
    %v1347 = vld [vmem:[#allocation2 + $0x28] sm:$0xff]
    %v1348 = vld [vmem:[#allocation2 + $0x30] sm:$0xff]
    %v1349 = vld [vmem:[#allocation2 + $0x38] sm:$0xff]
    %v1350 = vld [vmem:[#allocation2 + $0x40] sm:$0xff]
    %v1351 = vld [vmem:[#allocation2 + $0x48] sm:$0xff]
    %v1352 = vld [vmem:[#allocation2 + $0x50] sm:$0xff]
    %v1353 = vld [vmem:[#allocation2 + $0x58] sm:$0xff]
    %v1354 = vld [vmem:[#allocation2 + $0x60] sm:$0x7]
    %v1368 = vunpack.c.l.b16 %v1321
    %v1369 = vunpack.c.l.b16 %v1322
    %v1370 = vunpack.c.l.b16 %v1323
    %v1371 = vunpack.c.l.b16 %v1324
    %v1372 = vunpack.c.l.b16 %v1325
    %v1373 = vunpack.c.l.b16 %v1326
    %v1374 = vunpack.c.l.b16 %v1327
    %v1375 = vunpack.c.l.b16 %v1328
    %v1376 = vunpack.c.l.b16 %v1329
    %v1377 = vunpack.c.l.b16 %v1330
    %v1378 = vunpack.c.l.b16 %v1331
    %v1379 = vunpack.c.l.b16 %v1332
    %v1380 = vunpack.c.l.b16 %v1333
    %v1381 = vpack.c.b16 %v1369, %v1368
    %v1382 = vpack.c.b16 %v1371, %v1370
    %v1383 = vpack.c.b16 %v1373, %v1372
    %v1384 = vpack.c.b16 %v1375, %v1374
    %v1385 = vpack.c.b16 %v1377, %v1376
    %v1386 = vpack.c.b16 %v1379, %v1378
    %v1387 = vpack.c.b16 %v1380, %v1380
    %vm1388 = vsmask.f32 5376
    %v1390 = vshrl.u32 %v1381, 16
    %v1392 = vrot.slane %v1390, 2
    %v1393 = vshll.u32 %v1381, 16
    %v1395 = vrot.slane %v1393, 3
    %v1396 = vor.u32 %v1392, %v1395
    %v1398 = vshrl.u32 %v1382, 16
    %v1400 = vrot.slane %v1398, 2
    %v1401 = vshll.u32 %v1382, 16
    %v1403 = vrot.slane %v1401, 3
    %v1404 = vor.u32 %v1400, %v1403
    %v1405 = vsel %vm1388, %v1396, %v1404
    %v1407 = vshrl.u32 %v1383, 16
    %v1409 = vrot.slane %v1407, 2
    %v1410 = vshll.u32 %v1383, 16
    %v1412 = vrot.slane %v1410, 3
    %v1413 = vor.u32 %v1409, %v1412
    %v1414 = vsel %vm1388, %v1404, %v1413
    %v1416 = vshrl.u32 %v1384, 16
    %v1418 = vrot.slane %v1416, 2
    %v1419 = vshll.u32 %v1384, 16
    %v1421 = vrot.slane %v1419, 3
    %v1422 = vor.u32 %v1418, %v1421
    %v1423 = vsel %vm1388, %v1413, %v1422
    %v1425 = vshrl.u32 %v1385, 16
    %v1427 = vrot.slane %v1425, 2
    %v1428 = vshll.u32 %v1385, 16
    %v1430 = vrot.slane %v1428, 3
    %v1431 = vor.u32 %v1427, %v1430
    %v1432 = vsel %vm1388, %v1422, %v1431
    %v1434 = vshrl.u32 %v1386, 16
    %v1436 = vrot.slane %v1434, 2
    %v1437 = vshll.u32 %v1386, 16
    %v1439 = vrot.slane %v1437, 3
    %v1440 = vor.u32 %v1436, %v1439
    %v1441 = vsel %vm1388, %v1431, %v1440
    %v1443 = vshrl.u32 %v1387, 16
    %v1445 = vrot.slane %v1443, 2
    %v1446 = vshll.u32 %v1387, 16
    %v1448 = vrot.slane %v1446, 3
    %v1449 = vor.u32 %v1445, %v1448
    %v1450 = vsel %vm1388, %v1440, %v1449
    %v1459 = vunpack.c.l.b16 %v1334
    %v1460 = vunpack.c.l.b16 %v1335
    %v1461 = vunpack.c.l.b16 %v1336
    %v1462 = vunpack.c.l.b16 %v1337
    %v1463 = vunpack.c.l.b16 %v1338
    %v1464 = vunpack.c.l.b16 %v1339
    %v1465 = vunpack.c.l.b16 %v1340
    %v1466 = vunpack.c.l.b16 %v1341
    %v1467 = vpack.c.b16 %v1460, %v1459
    %v1468 = vpack.c.b16 %v1462, %v1461
    %v1469 = vpack.c.b16 %v1464, %v1463
    %v1470 = vpack.c.b16 %v1466, %v1465
    %v1476 = vsel %vm134, %v1405, 0
    %v1479 = vsel %vm134, %v1414, 0
    %v1482 = vsel %vm134, %v1423, 0
    %v1485 = vsel %vm134, %v1432, 0
    %v1488 = vsel %vm134, %v1441, 0
    %v1491 = vsel %vm134, %v1450, 0
    %v1494 = vsel %vm134, %v1449, 0
    %1496 = vmatprep.subr.bf16.mxu0 0
    %1497 = vmatpush1.bf16.msra.mxu0 %v1467
    %1498 = vmatprep.subr.bf16.mxu0 0
    %1499 = vmatpush1.bf16.msra.mxu0 %v1468
    %1500 = vmatprep.subr.bf16.mxu0 0
    %1501 = vmatpush1.bf16.msra.mxu0 %v1469
    %1502 = vmatprep.subr.bf16.mxu0 0
    %1503 = vmatpush1.bf16.msra.mxu0 %v1470
    %1504 = vmatprep.subr.bf16.mxu0 0
    %1505 = vmatpush1.bf16.msra.mxu0 0
    %1506 = vmatprep.subr.bf16.mxu0 0
    %1507 = vmatpush1.bf16.msra.mxu0 0
    %1508 = vmatprep.subr.bf16.mxu0 0
    %1509 = vmatpush1.bf16.msra.mxu0 0
    %1510 = vmatprep.subr.bf16.mxu0 0
    %1511 = vmatpush1.bf16.msra.mxu0 0
    %1512 = vmatprep.subr.bf16.mxu0 0
    %1513 = vmatpush1.bf16.msra.mxu0 0
    %1514 = vmatprep.subr.bf16.mxu0 0
    %1515 = vmatpush1.bf16.msra.mxu0 0
    %1516 = vmatprep.subr.bf16.mxu0 0
    %1517 = vmatpush1.bf16.msra.mxu0 0
    %1518 = vmatprep.subr.bf16.mxu0 0
    %1519 = vmatpush1.bf16.msra.mxu0 0
    %1520 = vmatprep.subr.bf16.mxu0 0
    %1521 = vmatpush1.bf16.msra.mxu0 0
    %1522 = vmatprep.subr.bf16.mxu0 0
    %1523 = vmatpush1.bf16.msra.mxu0 0
    %1524 = vmatprep.subr.bf16.mxu0 0
    %1525 = vmatpush1.bf16.msra.mxu0 0
    %1526 = vmatprep.subr.bf16.mxu0 0
    %1527 = vmatpush1.bf16.msra.mxu0 0
    %1528 = vmatprep.mubr.bf16.mxu0 0
    %1529 = vmatmul.mubr.bf16.gmra.mrb[0].mxu0 %v1476
    %v1530 = vpop.f32.mrb[0].mxu0
    %v1531 = vadd.f32 0.0, %v1530
    %v1532 = vpop.f32.mrb[0].mxu0
    %v1533 = vpop.f32.mrb[0].mxu0
    %v1534 = vadd.f32 0.0, %v1533
    %v1535 = vpop.f32.mrb[0].mxu0
    %1536 = vmatprep.mubr.bf16.mxu0 0
    %1537 = vmatmul.mubr.bf16.gmra.mrb[0].mxu0 %v1479
    %v1538 = vpop.f32.mrb[0].mxu0
    %v1539 = vadd.f32 0.0, %v1538
    %v1540 = vpop.f32.mrb[0].mxu0
    %v1541 = vpop.f32.mrb[0].mxu0
    %v1542 = vadd.f32 0.0, %v1541
    %v1543 = vpop.f32.mrb[0].mxu0
    %1544 = vmatprep.mubr.bf16.mxu0 0
    %1545 = vmatmul.mubr.bf16.gmra.mrb[0].mxu0 %v1482
    %v1546 = vpop.f32.mrb[0].mxu0
    %v1547 = vadd.f32 0.0, %v1546
    %v1548 = vpop.f32.mrb[0].mxu0
    %v1549 = vpop.f32.mrb[0].mxu0
    %v1550 = vadd.f32 0.0, %v1549
    %v1551 = vpop.f32.mrb[0].mxu0
    %1552 = vmatprep.mubr.bf16.mxu0 0
    %1553 = vmatmul.mubr.bf16.gmra.mrb[0].mxu0 %v1485
    %v1554 = vpop.f32.mrb[0].mxu0
    %v1555 = vadd.f32 0.0, %v1554
    %v1556 = vpop.f32.mrb[0].mxu0
    %v1557 = vpop.f32.mrb[0].mxu0
    %v1558 = vadd.f32 0.0, %v1557
    %v1559 = vpop.f32.mrb[0].mxu0
    %1560 = vmatprep.mubr.bf16.mxu0 0
    %1561 = vmatmul.mubr.bf16.gmra.mrb[0].mxu0 %v1488
    %v1562 = vpop.f32.mrb[0].mxu0
    %v1563 = vadd.f32 0.0, %v1562
    %v1564 = vpop.f32.mrb[0].mxu0
    %v1565 = vpop.f32.mrb[0].mxu0
    %v1566 = vadd.f32 0.0, %v1565
    %v1567 = vpop.f32.mrb[0].mxu0
    %1568 = vmatprep.mubr.bf16.mxu0 0
    %1569 = vmatmul.mubr.bf16.gmra.mrb[0].mxu0 %v1491
    %v1570 = vpop.f32.mrb[0].mxu0
    %v1571 = vadd.f32 0.0, %v1570
    %v1572 = vpop.f32.mrb[0].mxu0
    %v1573 = vpop.f32.mrb[0].mxu0
    %v1574 = vadd.f32 0.0, %v1573
    %v1575 = vpop.f32.mrb[0].mxu0
    %1576 = vmatprep.mubr.bf16.mxu0 0
    %1577 = vmatmul.mubr.bf16.gmra.mrb[0].mxu0 %v1494
    %v1578 = vpop.f32.mrb[0].mxu0
    %v1579 = vadd.f32 0.0, %v1578
    %v1580 = vpop.f32.mrb[0].mxu0
    %v1581 = vpop.f32.mrb[0].mxu0
    %v1582 = vpop.f32.mrb[0].mxu0
    %1583 = vdwg.mxu0
    %v1584 = vadd.f32 %v1342, %v1531
    %v1585 = vadd.f32 %v1343, %v1534
    %v1586 = vadd.f32 %v1344, %v1539
    %v1587 = vadd.f32 %v1345, %v1542
    %v1588 = vadd.f32 %v1346, %v1547
    %v1589 = vadd.f32 %v1347, %v1550
    %v1590 = vadd.f32 %v1348, %v1555
    %v1591 = vadd.f32 %v1349, %v1558
    %v1592 = vadd.f32 %v1350, %v1563
    %v1593 = vadd.f32 %v1351, %v1566
    %v1594 = vadd.f32 %v1352, %v1571
    %v1595 = vadd.f32 %v1353, %v1574
    %v1596 = vadd.f32 %v1354, %v1579
    %1597 = vst [vmem:[#allocation2] sm:$0xff] %v1584
    %1598 = vst [vmem:[#allocation2 + $0x8] sm:$0xff] %v1585
    %1599 = vst [vmem:[#allocation2 + $0x10] sm:$0xff] %v1586
    %1600 = vst [vmem:[#allocation2 + $0x18] sm:$0xff] %v1587
    %1601 = vst [vmem:[#allocation2 + $0x20] sm:$0xff] %v1588
    %1602 = vst [vmem:[#allocation2 + $0x28] sm:$0xff] %v1589
    %1603 = vst [vmem:[#allocation2 + $0x30] sm:$0xff] %v1590
    %1604 = vst [vmem:[#allocation2 + $0x38] sm:$0xff] %v1591
    %1605 = vst [vmem:[#allocation2 + $0x40] sm:$0xff] %v1592
    %1606 = vst [vmem:[#allocation2 + $0x48] sm:$0xff] %v1593
    %1607 = vst [vmem:[#allocation2 + $0x50] sm:$0xff] %v1594
    %1608 = vst [vmem:[#allocation2 + $0x58] sm:$0xff] %v1595
    %1609 = vst [vmem:[#allocation2 + $0x60] sm:$0x7] %v1596
    %v1610 = vld [vmem:[%s0 + $0x8] sm:$0x8]
    %v1611 = vld [vmem:[%s0 + $0xc] sm:$0xf]
    %v1612 = vld [vmem:[%s0 + $0x10] sm:$0xf]
    %v1613 = vld [vmem:[%s0 + $0x14] sm:$0xf]
    %v1614 = vld [vmem:[%s0 + $0x18] sm:$0xf]
    %v1615 = vld [vmem:[%s0 + $0x1c] sm:$0xf]
    %v1616 = vld [vmem:[%s0 + $0x20] sm:$0xf]
    %v1617 = vld [vmem:[%s0 + $0x24] sm:$0xf]
    %v1618 = vld [vmem:[%s0 + $0x28] sm:$0xf]
    %v1619 = vld [vmem:[%s0 + $0x2c] sm:$0xf]
    %v1620 = vld [vmem:[%s0 + $0x30] sm:$0xf]
    %v1621 = vld [vmem:[%s0 + $0x34] sm:$0xf]
    %v1622 = vld [vmem:[%s0 + $0x38] sm:$0xf]
    %v1623 = vld [vmem:[%s0 + $0x3c] sm:$0x1]
    %v1624 = vld [vmem:[#allocation3 + $0xc0] sm:$0xf]
    %v1625 = vld [vmem:[#allocation3 + $0xc4] sm:$0xf]
    %v1626 = vld [vmem:[#allocation3 + $0xc8] sm:$0xf]
    %v1627 = vld [vmem:[#allocation3 + $0xcc] sm:$0xf]
    %v1628 = vld [vmem:[#allocation3 + $0xd0] sm:$0xf]
    %v1629 = vld [vmem:[#allocation3 + $0xd4] sm:$0xf]
    %v1630 = vld [vmem:[#allocation3 + $0xd8] sm:$0xf]
    %v1631 = vld [vmem:[#allocation3 + $0xdc] sm:$0xf]
    %v1632 = vld [vmem:[#allocation2] sm:$0xff]
    %v1633 = vld [vmem:[#allocation2 + $0x8] sm:$0xff]
    %v1634 = vld [vmem:[#allocation2 + $0x10] sm:$0xff]
    %v1635 = vld [vmem:[#allocation2 + $0x18] sm:$0xff]
    %v1636 = vld [vmem:[#allocation2 + $0x20] sm:$0xff]
    %v1637 = vld [vmem:[#allocation2 + $0x28] sm:$0xff]
    %v1638 = vld [vmem:[#allocation2 + $0x30] sm:$0xff]
    %v1639 = vld [vmem:[#allocation2 + $0x38] sm:$0xff]
    %v1640 = vld [vmem:[#allocation2 + $0x40] sm:$0xff]
    %v1641 = vld [vmem:[#allocation2 + $0x48] sm:$0xff]
    %v1642 = vld [vmem:[#allocation2 + $0x50] sm:$0xff]
    %v1643 = vld [vmem:[#allocation2 + $0x58] sm:$0xff]
    %v1644 = vld [vmem:[#allocation2 + $0x60] sm:$0x7]
    %v1659 = vunpack.c.l.b16 %v1610
    %v1660 = vunpack.c.l.b16 %v1611
    %v1661 = vunpack.c.l.b16 %v1612
    %v1662 = vunpack.c.l.b16 %v1613
    %v1663 = vunpack.c.l.b16 %v1614
    %v1664 = vunpack.c.l.b16 %v1615
    %v1665 = vunpack.c.l.b16 %v1616
    %v1666 = vunpack.c.l.b16 %v1617
    %v1667 = vunpack.c.l.b16 %v1618
    %v1668 = vunpack.c.l.b16 %v1619
    %v1669 = vunpack.c.l.b16 %v1620
    %v1670 = vunpack.c.l.b16 %v1621
    %v1671 = vunpack.c.l.b16 %v1622
    %v1672 = vunpack.c.l.b16 %v1623
    %v1673 = vpack.c.b16 %v1660, %v1659
    %v1674 = vpack.c.b16 %v1662, %v1661
    %v1675 = vpack.c.b16 %v1664, %v1663
    %v1676 = vpack.c.b16 %v1666, %v1665
    %v1677 = vpack.c.b16 %v1668, %v1667
    %v1678 = vpack.c.b16 %v1670, %v1669
    %v1679 = vpack.c.b16 %v1672, %v1671
    %vm1680 = vcmask 1044480
    %v1681 = vrot.slane %v1673, 3
    %v1682 = vrot.slane %v1674, 3
    %v1683 = vsel %vm1680, %v1681, %v1682
    %v1684 = vrot.slane %v1675, 3
    %v1685 = vsel %vm1680, %v1682, %v1684
    %v1686 = vrot.slane %v1676, 3
    %v1687 = vsel %vm1680, %v1684, %v1686
    %v1688 = vrot.slane %v1677, 3
    %v1689 = vsel %vm1680, %v1686, %v1688
    %v1690 = vrot.slane %v1678, 3
    %v1691 = vsel %vm1680, %v1688, %v1690
    %v1692 = vrot.slane %v1679, 3
    %v1693 = vsel %vm1680, %v1690, %v1692
    %v1702 = vunpack.c.l.b16 %v1624
    %v1703 = vunpack.c.l.b16 %v1625
    %v1704 = vunpack.c.l.b16 %v1626
    %v1705 = vunpack.c.l.b16 %v1627
    %v1706 = vunpack.c.l.b16 %v1628
    %v1707 = vunpack.c.l.b16 %v1629
    %v1708 = vunpack.c.l.b16 %v1630
    %v1709 = vunpack.c.l.b16 %v1631
    %v1710 = vpack.c.b16 %v1703, %v1702
    %v1711 = vpack.c.b16 %v1705, %v1704
    %v1712 = vpack.c.b16 %v1707, %v1706
    %v1713 = vpack.c.b16 %v1709, %v1708
    %v1719 = vsel %vm134, %v1683, 0
    %v1722 = vsel %vm134, %v1685, 0
    %v1725 = vsel %vm134, %v1687, 0
    %v1728 = vsel %vm134, %v1689, 0
    %v1731 = vsel %vm134, %v1691, 0
    %v1734 = vsel %vm134, %v1693, 0
    %v1737 = vsel %vm134, %v1692, 0
    %1739 = vmatprep.subr.bf16.mxu0 0
    %1740 = vmatpush1.bf16.msra.mxu0 %v1710
    %1741 = vmatprep.subr.bf16.mxu0 0
    %1742 = vmatpush1.bf16.msra.mxu0 %v1711
    %1743 = vmatprep.subr.bf16.mxu0 0
    %1744 = vmatpush1.bf16.msra.mxu0 %v1712
    %1745 = vmatprep.subr.bf16.mxu0 0
    %1746 = vmatpush1.bf16.msra.mxu0 %v1713
    %1747 = vmatprep.subr.bf16.mxu0 0
    %1748 = vmatpush1.bf16.msra.mxu0 0
    %1749 = vmatprep.subr.bf16.mxu0 0
    %1750 = vmatpush1.bf16.msra.mxu0 0
    %1751 = vmatprep.subr.bf16.mxu0 0
    %1752 = vmatpush1.bf16.msra.mxu0 0
    %1753 = vmatprep.subr.bf16.mxu0 0
    %1754 = vmatpush1.bf16.msra.mxu0 0
    %1755 = vmatprep.subr.bf16.mxu0 0
    %1756 = vmatpush1.bf16.msra.mxu0 0
    %1757 = vmatprep.subr.bf16.mxu0 0
    %1758 = vmatpush1.bf16.msra.mxu0 0
    %1759 = vmatprep.subr.bf16.mxu0 0
    %1760 = vmatpush1.bf16.msra.mxu0 0
    %1761 = vmatprep.subr.bf16.mxu0 0
    %1762 = vmatpush1.bf16.msra.mxu0 0
    %1763 = vmatprep.subr.bf16.mxu0 0
    %1764 = vmatpush1.bf16.msra.mxu0 0
    %1765 = vmatprep.subr.bf16.mxu0 0
    %1766 = vmatpush1.bf16.msra.mxu0 0
    %1767 = vmatprep.subr.bf16.mxu0 0
    %1768 = vmatpush1.bf16.msra.mxu0 0
    %1769 = vmatprep.subr.bf16.mxu0 0
    %1770 = vmatpush1.bf16.msra.mxu0 0
    %1771 = vmatprep.mubr.bf16.mxu0 0
    %1772 = vmatmul.mubr.bf16.gmra.mrb[0].mxu0 %v1719
    %v1773 = vpop.f32.mrb[0].mxu0
    %v1774 = vadd.f32 0.0, %v1773
    %v1775 = vpop.f32.mrb[0].mxu0
    %v1776 = vpop.f32.mrb[0].mxu0
    %v1777 = vadd.f32 0.0, %v1776
    %v1778 = vpop.f32.mrb[0].mxu0
    %1779 = vmatprep.mubr.bf16.mxu0 0
    %1780 = vmatmul.mubr.bf16.gmra.mrb[0].mxu0 %v1722
    %v1781 = vpop.f32.mrb[0].mxu0
    %v1782 = vadd.f32 0.0, %v1781
    %v1783 = vpop.f32.mrb[0].mxu0
    %v1784 = vpop.f32.mrb[0].mxu0
    %v1785 = vadd.f32 0.0, %v1784
    %v1786 = vpop.f32.mrb[0].mxu0
    %1787 = vmatprep.mubr.bf16.mxu0 0
    %1788 = vmatmul.mubr.bf16.gmra.mrb[0].mxu0 %v1725
    %v1789 = vpop.f32.mrb[0].mxu0
    %v1790 = vadd.f32 0.0, %v1789
    %v1791 = vpop.f32.mrb[0].mxu0
    %v1792 = vpop.f32.mrb[0].mxu0
    %v1793 = vadd.f32 0.0, %v1792
    %v1794 = vpop.f32.mrb[0].mxu0
    %1795 = vmatprep.mubr.bf16.mxu0 0
    %1796 = vmatmul.mubr.bf16.gmra.mrb[0].mxu0 %v1728
    %v1797 = vpop.f32.mrb[0].mxu0
    %v1798 = vadd.f32 0.0, %v1797
    %v1799 = vpop.f32.mrb[0].mxu0
    %v1800 = vpop.f32.mrb[0].mxu0
    %v1801 = vadd.f32 0.0, %v1800
    %v1802 = vpop.f32.mrb[0].mxu0
    %1803 = vmatprep.mubr.bf16.mxu0 0
    %1804 = vmatmul.mubr.bf16.gmra.mrb[0].mxu0 %v1731
    %v1805 = vpop.f32.mrb[0].mxu0
    %v1806 = vadd.f32 0.0, %v1805
    %v1807 = vpop.f32.mrb[0].mxu0
    %v1808 = vpop.f32.mrb[0].mxu0
    %v1809 = vadd.f32 0.0, %v1808
    %v1810 = vpop.f32.mrb[0].mxu0
    %1811 = vmatprep.mubr.bf16.mxu0 0
    %1812 = vmatmul.mubr.bf16.gmra.mrb[0].mxu0 %v1734
    %v1813 = vpop.f32.mrb[0].mxu0
    %v1814 = vadd.f32 0.0, %v1813
    %v1815 = vpop.f32.mrb[0].mxu0
    %v1816 = vpop.f32.mrb[0].mxu0
    %v1817 = vadd.f32 0.0, %v1816
    %v1818 = vpop.f32.mrb[0].mxu0
    %1819 = vmatprep.mubr.bf16.mxu0 0
    %1820 = vmatmul.mubr.bf16.gmra.mrb[0].mxu0 %v1737
    %v1821 = vpop.f32.mrb[0].mxu0
    %v1822 = vadd.f32 0.0, %v1821
    %v1823 = vpop.f32.mrb[0].mxu0
    %v1824 = vpop.f32.mrb[0].mxu0
    %v1825 = vpop.f32.mrb[0].mxu0
    %1826 = vdwg.mxu0
    %v1827 = vadd.f32 %v1632, %v1774
    %v1828 = vadd.f32 %v1633, %v1777
    %v1829 = vadd.f32 %v1634, %v1782
    %v1830 = vadd.f32 %v1635, %v1785
    %v1831 = vadd.f32 %v1636, %v1790
    %v1832 = vadd.f32 %v1637, %v1793
    %v1833 = vadd.f32 %v1638, %v1798
    %v1834 = vadd.f32 %v1639, %v1801
    %v1835 = vadd.f32 %v1640, %v1806
    %v1836 = vadd.f32 %v1641, %v1809
    %v1837 = vadd.f32 %v1642, %v1814
    %v1838 = vadd.f32 %v1643, %v1817
    %v1839 = vadd.f32 %v1644, %v1822
    %1840 = vst [vmem:[#allocation2] sm:$0xff] %v1827
    %1841 = vst [vmem:[#allocation2 + $0x8] sm:$0xff] %v1828
    %1842 = vst [vmem:[#allocation2 + $0x10] sm:$0xff] %v1829
    %1843 = vst [vmem:[#allocation2 + $0x18] sm:$0xff] %v1830
    %1844 = vst [vmem:[#allocation2 + $0x20] sm:$0xff] %v1831
    %1845 = vst [vmem:[#allocation2 + $0x28] sm:$0xff] %v1832
    %1846 = vst [vmem:[#allocation2 + $0x30] sm:$0xff] %v1833
    %1847 = vst [vmem:[#allocation2 + $0x38] sm:$0xff] %v1834
    %1848 = vst [vmem:[#allocation2 + $0x40] sm:$0xff] %v1835
    %1849 = vst [vmem:[#allocation2 + $0x48] sm:$0xff] %v1836
    %1850 = vst [vmem:[#allocation2 + $0x50] sm:$0xff] %v1837
    %1851 = vst [vmem:[#allocation2 + $0x58] sm:$0xff] %v1838
    %1852 = vst [vmem:[#allocation2 + $0x60] sm:$0x7] %v1839
    %v1853 = vld [vmem:[%s0 + $0x8] sm:$0x8]
    %v1854 = vld [vmem:[%s0 + $0xc] sm:$0xf]
    %v1855 = vld [vmem:[%s0 + $0x10] sm:$0xf]
    %v1856 = vld [vmem:[%s0 + $0x14] sm:$0xf]
    %v1857 = vld [vmem:[%s0 + $0x18] sm:$0xf]
    %v1858 = vld [vmem:[%s0 + $0x1c] sm:$0xf]
    %v1859 = vld [vmem:[%s0 + $0x20] sm:$0xf]
    %v1860 = vld [vmem:[%s0 + $0x24] sm:$0xf]
    %v1861 = vld [vmem:[%s0 + $0x28] sm:$0xf]
    %v1862 = vld [vmem:[%s0 + $0x2c] sm:$0xf]
    %v1863 = vld [vmem:[%s0 + $0x30] sm:$0xf]
    %v1864 = vld [vmem:[%s0 + $0x34] sm:$0xf]
    %v1865 = vld [vmem:[%s0 + $0x38] sm:$0xf]
    %v1866 = vld [vmem:[%s0 + $0x3c] sm:$0x1]
    %v1867 = vld [vmem:[#allocation3 + $0xe0] sm:$0xf]
    %v1868 = vld [vmem:[#allocation3 + $0xe4] sm:$0xf]
    %v1869 = vld [vmem:[#allocation3 + $0xe8] sm:$0xf]
    %v1870 = vld [vmem:[#allocation3 + $0xec] sm:$0xf]
    %v1871 = vld [vmem:[#allocation3 + $0xf0] sm:$0xf]
    %v1872 = vld [vmem:[#allocation3 + $0xf4] sm:$0xf]
    %v1873 = vld [vmem:[#allocation3 + $0xf8] sm:$0xf]
    %v1874 = vld [vmem:[#allocation3 + $0xfc] sm:$0xf]
    %v1875 = vld [vmem:[#allocation2] sm:$0xff]
    %v1876 = vld [vmem:[#allocation2 + $0x8] sm:$0xff]
    %v1877 = vld [vmem:[#allocation2 + $0x10] sm:$0xff]
    %v1878 = vld [vmem:[#allocation2 + $0x18] sm:$0xff]
    %v1879 = vld [vmem:[#allocation2 + $0x20] sm:$0xff]
    %v1880 = vld [vmem:[#allocation2 + $0x28] sm:$0xff]
    %v1881 = vld [vmem:[#allocation2 + $0x30] sm:$0xff]
    %v1882 = vld [vmem:[#allocation2 + $0x38] sm:$0xff]
    %v1883 = vld [vmem:[#allocation2 + $0x40] sm:$0xff]
    %v1884 = vld [vmem:[#allocation2 + $0x48] sm:$0xff]
    %v1885 = vld [vmem:[#allocation2 + $0x50] sm:$0xff]
    %v1886 = vld [vmem:[#allocation2 + $0x58] sm:$0xff]
    %v1887 = vld [vmem:[#allocation2 + $0x60] sm:$0x7]
    %v1902 = vunpack.c.l.b16 %v1853
    %v1903 = vunpack.c.l.b16 %v1854
    %v1904 = vunpack.c.l.b16 %v1855
    %v1905 = vunpack.c.l.b16 %v1856
    %v1906 = vunpack.c.l.b16 %v1857
    %v1907 = vunpack.c.l.b16 %v1858
    %v1908 = vunpack.c.l.b16 %v1859
    %v1909 = vunpack.c.l.b16 %v1860
    %v1910 = vunpack.c.l.b16 %v1861
    %v1911 = vunpack.c.l.b16 %v1862
    %v1912 = vunpack.c.l.b16 %v1863
    %v1913 = vunpack.c.l.b16 %v1864
    %v1914 = vunpack.c.l.b16 %v1865
    %v1915 = vunpack.c.l.b16 %v1866
    %v1916 = vpack.c.b16 %v1903, %v1902
    %v1917 = vpack.c.b16 %v1905, %v1904
    %v1918 = vpack.c.b16 %v1907, %v1906
    %v1919 = vpack.c.b16 %v1909, %v1908
    %v1920 = vpack.c.b16 %v1911, %v1910
    %v1921 = vpack.c.b16 %v1913, %v1912
    %v1922 = vpack.c.b16 %v1915, %v1914
    %vm1923 = vsmask.f32 4352
    %v1925 = vshrl.u32 %v1916, 16
    %v1927 = vrot.slane %v1925, 3
    %v1928 = vshll.u32 %v1916, 16
    %v1930 = vrot.slane %v1928, 4
    %v1931 = vor.u32 %v1927, %v1930
    %v1933 = vshrl.u32 %v1917, 16
    %v1935 = vrot.slane %v1933, 3
    %v1936 = vshll.u32 %v1917, 16
    %v1938 = vrot.slane %v1936, 4
    %v1939 = vor.u32 %v1935, %v1938
    %v1940 = vsel %vm1923, %v1931, %v1939
    %v1942 = vshrl.u32 %v1918, 16
    %v1944 = vrot.slane %v1942, 3
    %v1945 = vshll.u32 %v1918, 16
    %v1947 = vrot.slane %v1945, 4
    %v1948 = vor.u32 %v1944, %v1947
    %v1949 = vsel %vm1923, %v1939, %v1948
    %v1951 = vshrl.u32 %v1919, 16
    %v1953 = vrot.slane %v1951, 3
    %v1954 = vshll.u32 %v1919, 16
    %v1956 = vrot.slane %v1954, 4
    %v1957 = vor.u32 %v1953, %v1956
    %v1958 = vsel %vm1923, %v1948, %v1957
    %v1960 = vshrl.u32 %v1920, 16
    %v1962 = vrot.slane %v1960, 3
    %v1963 = vshll.u32 %v1920, 16
    %v1965 = vrot.slane %v1963, 4
    %v1966 = vor.u32 %v1962, %v1965
    %v1967 = vsel %vm1923, %v1957, %v1966
    %v1969 = vshrl.u32 %v1921, 16
    %v1971 = vrot.slane %v1969, 3
    %v1972 = vshll.u32 %v1921, 16
    %v1974 = vrot.slane %v1972, 4
    %v1975 = vor.u32 %v1971, %v1974
    %v1976 = vsel %vm1923, %v1966, %v1975
    %v1978 = vshrl.u32 %v1922, 16
    %v1980 = vrot.slane %v1978, 3
    %v1981 = vshll.u32 %v1922, 16
    %v1983 = vrot.slane %v1981, 4
    %v1984 = vor.u32 %v1980, %v1983
    %v1985 = vsel %vm1923, %v1975, %v1984
    %v1994 = vunpack.c.l.b16 %v1867
    %v1995 = vunpack.c.l.b16 %v1868
    %v1996 = vunpack.c.l.b16 %v1869
    %v1997 = vunpack.c.l.b16 %v1870
    %v1998 = vunpack.c.l.b16 %v1871
    %v1999 = vunpack.c.l.b16 %v1872
    %v2000 = vunpack.c.l.b16 %v1873
    %v2001 = vunpack.c.l.b16 %v1874
    %v2002 = vpack.c.b16 %v1995, %v1994
    %v2003 = vpack.c.b16 %v1997, %v1996
    %v2004 = vpack.c.b16 %v1999, %v1998
    %v2005 = vpack.c.b16 %v2001, %v2000
    %v2011 = vsel %vm134, %v1940, 0
    %v2014 = vsel %vm134, %v1949, 0
    %v2017 = vsel %vm134, %v1958, 0
    %v2020 = vsel %vm134, %v1967, 0
    %v2023 = vsel %vm134, %v1976, 0
    %v2026 = vsel %vm134, %v1985, 0
    %v2029 = vsel %vm134, %v1984, 0
    %2031 = vmatprep.subr.bf16.mxu0 0
    %2032 = vmatpush1.bf16.msra.mxu0 %v2002
    %2033 = vmatprep.subr.bf16.mxu0 0
    %2034 = vmatpush1.bf16.msra.mxu0 %v2003
    %2035 = vmatprep.subr.bf16.mxu0 0
    %2036 = vmatpush1.bf16.msra.mxu0 %v2004
    %2037 = vmatprep.subr.bf16.mxu0 0
    %2038 = vmatpush1.bf16.msra.mxu0 %v2005
    %2039 = vmatprep.subr.bf16.mxu0 0
    %2040 = vmatpush1.bf16.msra.mxu0 0
    %2041 = vmatprep.subr.bf16.mxu0 0
    %2042 = vmatpush1.bf16.msra.mxu0 0
    %2043 = vmatprep.subr.bf16.mxu0 0
    %2044 = vmatpush1.bf16.msra.mxu0 0
    %2045 = vmatprep.subr.bf16.mxu0 0
    %2046 = vmatpush1.bf16.msra.mxu0 0
    %2047 = vmatprep.subr.bf16.mxu0 0
    %2048 = vmatpush1.bf16.msra.mxu0 0
    %2049 = vmatprep.subr.bf16.mxu0 0
    %2050 = vmatpush1.bf16.msra.mxu0 0
    %2051 = vmatprep.subr.bf16.mxu0 0
    %2052 = vmatpush1.bf16.msra.mxu0 0
    %2053 = vmatprep.subr.bf16.mxu0 0
    %2054 = vmatpush1.bf16.msra.mxu0 0
    %2055 = vmatprep.subr.bf16.mxu0 0
    %2056 = vmatpush1.bf16.msra.mxu0 0
    %2057 = vmatprep.subr.bf16.mxu0 0
    %2058 = vmatpush1.bf16.msra.mxu0 0
    %2059 = vmatprep.subr.bf16.mxu0 0
    %2060 = vmatpush1.bf16.msra.mxu0 0
    %2061 = vmatprep.subr.bf16.mxu0 0
    %2062 = vmatpush1.bf16.msra.mxu0 0
    %2063 = vmatprep.mubr.bf16.mxu0 0
    %2064 = vmatmul.mubr.bf16.gmra.mrb[0].mxu0 %v2011
    %v2065 = vpop.f32.mrb[0].mxu0
    %v2066 = vadd.f32 0.0, %v2065
    %v2067 = vpop.f32.mrb[0].mxu0
    %v2068 = vpop.f32.mrb[0].mxu0
    %v2069 = vadd.f32 0.0, %v2068
    %v2070 = vpop.f32.mrb[0].mxu0
    %2071 = vmatprep.mubr.bf16.mxu0 0
    %2072 = vmatmul.mubr.bf16.gmra.mrb[0].mxu0 %v2014
    %v2073 = vpop.f32.mrb[0].mxu0
    %v2074 = vadd.f32 0.0, %v2073
    %v2075 = vpop.f32.mrb[0].mxu0
    %v2076 = vpop.f32.mrb[0].mxu0
    %v2077 = vadd.f32 0.0, %v2076
    %v2078 = vpop.f32.mrb[0].mxu0
    %2079 = vmatprep.mubr.bf16.mxu0 0
    %2080 = vmatmul.mubr.bf16.gmra.mrb[0].mxu0 %v2017
    %v2081 = vpop.f32.mrb[0].mxu0
    %v2082 = vadd.f32 0.0, %v2081
    %v2083 = vpop.f32.mrb[0].mxu0
    %v2084 = vpop.f32.mrb[0].mxu0
    %v2085 = vadd.f32 0.0, %v2084
    %v2086 = vpop.f32.mrb[0].mxu0
    %2087 = vmatprep.mubr.bf16.mxu0 0
    %2088 = vmatmul.mubr.bf16.gmra.mrb[0].mxu0 %v2020
    %v2089 = vpop.f32.mrb[0].mxu0
    %v2090 = vadd.f32 0.0, %v2089
    %v2091 = vpop.f32.mrb[0].mxu0
    %v2092 = vpop.f32.mrb[0].mxu0
    %v2093 = vadd.f32 0.0, %v2092
    %v2094 = vpop.f32.mrb[0].mxu0
    %2095 = vmatprep.mubr.bf16.mxu0 0
    %2096 = vmatmul.mubr.bf16.gmra.mrb[0].mxu0 %v2023
    %v2097 = vpop.f32.mrb[0].mxu0
    %v2098 = vadd.f32 0.0, %v2097
    %v2099 = vpop.f32.mrb[0].mxu0
    %v2100 = vpop.f32.mrb[0].mxu0
    %v2101 = vadd.f32 0.0, %v2100
    %v2102 = vpop.f32.mrb[0].mxu0
    %2103 = vmatprep.mubr.bf16.mxu0 0
    %2104 = vmatmul.mubr.bf16.gmra.mrb[0].mxu0 %v2026
    %v2105 = vpop.f32.mrb[0].mxu0
    %v2106 = vadd.f32 0.0, %v2105
    %v2107 = vpop.f32.mrb[0].mxu0
    %v2108 = vpop.f32.mrb[0].mxu0
    %v2109 = vadd.f32 0.0, %v2108
    %v2110 = vpop.f32.mrb[0].mxu0
    %2111 = vmatprep.mubr.bf16.mxu0 0
    %2112 = vmatmul.mubr.bf16.gmra.mrb[0].mxu0 %v2029
    %v2113 = vpop.f32.mrb[0].mxu0
    %v2114 = vadd.f32 0.0, %v2113
    %v2115 = vpop.f32.mrb[0].mxu0
    %v2116 = vpop.f32.mrb[0].mxu0
    %v2117 = vpop.f32.mrb[0].mxu0
    %2118 = vdwg.mxu0
    %v2119 = vadd.f32 %v1875, %v2066
    %v2120 = vadd.f32 %v1876, %v2069
    %v2121 = vadd.f32 %v1877, %v2074
    %v2122 = vadd.f32 %v1878, %v2077
    %v2123 = vadd.f32 %v1879, %v2082
    %v2124 = vadd.f32 %v1880, %v2085
    %v2125 = vadd.f32 %v1881, %v2090
    %v2126 = vadd.f32 %v1882, %v2093
    %v2127 = vadd.f32 %v1883, %v2098
    %v2128 = vadd.f32 %v1884, %v2101
    %v2129 = vadd.f32 %v1885, %v2106
    %v2130 = vadd.f32 %v1886, %v2109
    %v2131 = vadd.f32 %v1887, %v2114
    %2132 = vst [vmem:[#allocation2] sm:$0xff] %v2119
    %2133 = vst [vmem:[#allocation2 + $0x8] sm:$0xff] %v2120
    %2134 = vst [vmem:[#allocation2 + $0x10] sm:$0xff] %v2121
    %2135 = vst [vmem:[#allocation2 + $0x18] sm:$0xff] %v2122
    %2136 = vst [vmem:[#allocation2 + $0x20] sm:$0xff] %v2123
    %2137 = vst [vmem:[#allocation2 + $0x28] sm:$0xff] %v2124
    %2138 = vst [vmem:[#allocation2 + $0x30] sm:$0xff] %v2125
    %2139 = vst [vmem:[#allocation2 + $0x38] sm:$0xff] %v2126
    %2140 = vst [vmem:[#allocation2 + $0x40] sm:$0xff] %v2127
    %2141 = vst [vmem:[#allocation2 + $0x48] sm:$0xff] %v2128
    %2142 = vst [vmem:[#allocation2 + $0x50] sm:$0xff] %v2129
    %2143 = vst [vmem:[#allocation2 + $0x58] sm:$0xff] %v2130
    %2144 = vst [vmem:[#allocation2 + $0x60] sm:$0x7] %v2131
    %v2145 = vld [vmem:[%s0 + $0xc] sm:$0xf]
    %v2146 = vld [vmem:[%s0 + $0x10] sm:$0xf]
    %v2147 = vld [vmem:[%s0 + $0x14] sm:$0xf]
    %v2148 = vld [vmem:[%s0 + $0x18] sm:$0xf]
    %v2149 = vld [vmem:[%s0 + $0x1c] sm:$0xf]
    %v2150 = vld [vmem:[%s0 + $0x20] sm:$0xf]
    %v2151 = vld [vmem:[%s0 + $0x24] sm:$0xf]
    %v2152 = vld [vmem:[%s0 + $0x28] sm:$0xf]
    %v2153 = vld [vmem:[%s0 + $0x2c] sm:$0xf]
    %v2154 = vld [vmem:[%s0 + $0x30] sm:$0xf]
    %v2155 = vld [vmem:[%s0 + $0x34] sm:$0xf]
    %v2156 = vld [vmem:[%s0 + $0x38] sm:$0xf]
    %v2157 = vld [vmem:[%s0 + $0x3c] sm:$0x3]
    %v2158 = vld [vmem:[#allocation3 + $0x100] sm:$0xf]
    %v2159 = vld [vmem:[#allocation3 + $0x104] sm:$0xf]
    %v2160 = vld [vmem:[#allocation3 + $0x108] sm:$0xf]
    %v2161 = vld [vmem:[#allocation3 + $0x10c] sm:$0xf]
    %v2162 = vld [vmem:[#allocation3 + $0x110] sm:$0xf]
    %v2163 = vld [vmem:[#allocation3 + $0x114] sm:$0xf]
    %v2164 = vld [vmem:[#allocation3 + $0x118] sm:$0xf]
    %v2165 = vld [vmem:[#allocation3 + $0x11c] sm:$0xf]
    %v2166 = vld [vmem:[#allocation2] sm:$0xff]
    %v2167 = vld [vmem:[#allocation2 + $0x8] sm:$0xff]
    %v2168 = vld [vmem:[#allocation2 + $0x10] sm:$0xff]
    %v2169 = vld [vmem:[#allocation2 + $0x18] sm:$0xff]
    %v2170 = vld [vmem:[#allocation2 + $0x20] sm:$0xff]
    %v2171 = vld [vmem:[#allocation2 + $0x28] sm:$0xff]
    %v2172 = vld [vmem:[#allocation2 + $0x30] sm:$0xff]
    %v2173 = vld [vmem:[#allocation2 + $0x38] sm:$0xff]
    %v2174 = vld [vmem:[#allocation2 + $0x40] sm:$0xff]
    %v2175 = vld [vmem:[#allocation2 + $0x48] sm:$0xff]
    %v2176 = vld [vmem:[#allocation2 + $0x50] sm:$0xff]
    %v2177 = vld [vmem:[#allocation2 + $0x58] sm:$0xff]
    %v2178 = vld [vmem:[#allocation2 + $0x60] sm:$0x7]
    %v2192 = vunpack.c.l.b16 %v2145
    %v2193 = vunpack.c.l.b16 %v2146
    %v2194 = vunpack.c.l.b16 %v2147
    %v2195 = vunpack.c.l.b16 %v2148
    %v2196 = vunpack.c.l.b16 %v2149
    %v2197 = vunpack.c.l.b16 %v2150
    %v2198 = vunpack.c.l.b16 %v2151
    %v2199 = vunpack.c.l.b16 %v2152
    %v2200 = vunpack.c.l.b16 %v2153
    %v2201 = vunpack.c.l.b16 %v2154
    %v2202 = vunpack.c.l.b16 %v2155
    %v2203 = vunpack.c.l.b16 %v2156
    %v2204 = vunpack.c.l.b16 %v2157
    %v2205 = vpack.c.b16 %v2193, %v2192
    %v2206 = vpack.c.b16 %v2195, %v2194
    %v2207 = vpack.c.b16 %v2197, %v2196
    %v2208 = vpack.c.b16 %v2199, %v2198
    %v2209 = vpack.c.b16 %v2201, %v2200
    %v2210 = vpack.c.b16 %v2203, %v2202
    %v2211 = vpack.c.b16 %v2204, %v2204
    %v2220 = vunpack.c.l.b16 %v2158
    %v2221 = vunpack.c.l.b16 %v2159
    %v2222 = vunpack.c.l.b16 %v2160
    %v2223 = vunpack.c.l.b16 %v2161
    %v2224 = vunpack.c.l.b16 %v2162
    %v2225 = vunpack.c.l.b16 %v2163
    %v2226 = vunpack.c.l.b16 %v2164
    %v2227 = vunpack.c.l.b16 %v2165
    %v2228 = vpack.c.b16 %v2221, %v2220
    %v2229 = vpack.c.b16 %v2223, %v2222
    %v2230 = vpack.c.b16 %v2225, %v2224
    %v2231 = vpack.c.b16 %v2227, %v2226
    %v2237 = vsel %vm134, %v2205, 0
    %v2240 = vsel %vm134, %v2206, 0
    %v2243 = vsel %vm134, %v2207, 0
    %v2246 = vsel %vm134, %v2208, 0
    %v2249 = vsel %vm134, %v2209, 0
    %v2252 = vsel %vm134, %v2210, 0
    %v2255 = vsel %vm134, %v2211, 0
    %2257 = vmatprep.subr.bf16.mxu0 0
    %2258 = vmatpush1.bf16.msra.mxu0 %v2228
    %2259 = vmatprep.subr.bf16.mxu0 0
    %2260 = vmatpush1.bf16.msra.mxu0 %v2229
    %2261 = vmatprep.subr.bf16.mxu0 0
    %2262 = vmatpush1.bf16.msra.mxu0 %v2230
    %2263 = vmatprep.subr.bf16.mxu0 0
    %2264 = vmatpush1.bf16.msra.mxu0 %v2231
    %2265 = vmatprep.subr.bf16.mxu0 0
    %2266 = vmatpush1.bf16.msra.mxu0 0
    %2267 = vmatprep.subr.bf16.mxu0 0
    %2268 = vmatpush1.bf16.msra.mxu0 0
    %2269 = vmatprep.subr.bf16.mxu0 0
    %2270 = vmatpush1.bf16.msra.mxu0 0
    %2271 = vmatprep.subr.bf16.mxu0 0
    %2272 = vmatpush1.bf16.msra.mxu0 0
    %2273 = vmatprep.subr.bf16.mxu0 0
    %2274 = vmatpush1.bf16.msra.mxu0 0
    %2275 = vmatprep.subr.bf16.mxu0 0
    %2276 = vmatpush1.bf16.msra.mxu0 0
    %2277 = vmatprep.subr.bf16.mxu0 0
    %2278 = vmatpush1.bf16.msra.mxu0 0
    %2279 = vmatprep.subr.bf16.mxu0 0
    %2280 = vmatpush1.bf16.msra.mxu0 0
    %2281 = vmatprep.subr.bf16.mxu0 0
    %2282 = vmatpush1.bf16.msra.mxu0 0
    %2283 = vmatprep.subr.bf16.mxu0 0
    %2284 = vmatpush1.bf16.msra.mxu0 0
    %2285 = vmatprep.subr.bf16.mxu0 0
    %2286 = vmatpush1.bf16.msra.mxu0 0
    %2287 = vmatprep.subr.bf16.mxu0 0
    %2288 = vmatpush1.bf16.msra.mxu0 0
    %2289 = vmatprep.mubr.bf16.mxu0 0
    %2290 = vmatmul.mubr.bf16.gmra.mrb[0].mxu0 %v2237
    %v2291 = vpop.f32.mrb[0].mxu0
    %v2292 = vadd.f32 0.0, %v2291
    %v2293 = vpop.f32.mrb[0].mxu0
    %v2294 = vpop.f32.mrb[0].mxu0
    %v2295 = vadd.f32 0.0, %v2294
    %v2296 = vpop.f32.mrb[0].mxu0
    %2297 = vmatprep.mubr.bf16.mxu0 0
    %2298 = vmatmul.mubr.bf16.gmra.mrb[0].mxu0 %v2240
    %v2299 = vpop.f32.mrb[0].mxu0
    %v2300 = vadd.f32 0.0, %v2299
    %v2301 = vpop.f32.mrb[0].mxu0
    %v2302 = vpop.f32.mrb[0].mxu0
    %v2303 = vadd.f32 0.0, %v2302
    %v2304 = vpop.f32.mrb[0].mxu0
    %2305 = vmatprep.mubr.bf16.mxu0 0
    %2306 = vmatmul.mubr.bf16.gmra.mrb[0].mxu0 %v2243
    %v2307 = vpop.f32.mrb[0].mxu0
    %v2308 = vadd.f32 0.0, %v2307
    %v2309 = vpop.f32.mrb[0].mxu0
    %v2310 = vpop.f32.mrb[0].mxu0
    %v2311 = vadd.f32 0.0, %v2310
    %v2312 = vpop.f32.mrb[0].mxu0
    %2313 = vmatprep.mubr.bf16.mxu0 0
    %2314 = vmatmul.mubr.bf16.gmra.mrb[0].mxu0 %v2246
    %v2315 = vpop.f32.mrb[0].mxu0
    %v2316 = vadd.f32 0.0, %v2315
    %v2317 = vpop.f32.mrb[0].mxu0
    %v2318 = vpop.f32.mrb[0].mxu0
    %v2319 = vadd.f32 0.0, %v2318
    %v2320 = vpop.f32.mrb[0].mxu0
    %2321 = vmatprep.mubr.bf16.mxu0 0
    %2322 = vmatmul.mubr.bf16.gmra.mrb[0].mxu0 %v2249
    %v2323 = vpop.f32.mrb[0].mxu0
    %v2324 = vadd.f32 0.0, %v2323
    %v2325 = vpop.f32.mrb[0].mxu0
    %v2326 = vpop.f32.mrb[0].mxu0
    %v2327 = vadd.f32 0.0, %v2326
    %v2328 = vpop.f32.mrb[0].mxu0
    %2329 = vmatprep.mubr.bf16.mxu0 0
    %2330 = vmatmul.mubr.bf16.gmra.mrb[0].mxu0 %v2252
    %v2331 = vpop.f32.mrb[0].mxu0
    %v2332 = vadd.f32 0.0, %v2331
    %v2333 = vpop.f32.mrb[0].mxu0
    %v2334 = vpop.f32.mrb[0].mxu0
    %v2335 = vadd.f32 0.0, %v2334
    %v2336 = vpop.f32.mrb[0].mxu0
    %2337 = vmatprep.mubr.bf16.mxu0 0
    %2338 = vmatmul.mubr.bf16.gmra.mrb[0].mxu0 %v2255
    %v2339 = vpop.f32.mrb[0].mxu0
    %v2340 = vadd.f32 0.0, %v2339
    %v2341 = vpop.f32.mrb[0].mxu0
    %v2342 = vpop.f32.mrb[0].mxu0
    %v2343 = vpop.f32.mrb[0].mxu0
    %2344 = vdwg.mxu0
    %v2345 = vadd.f32 %v2166, %v2292
    %v2346 = vadd.f32 %v2167, %v2295
    %v2347 = vadd.f32 %v2168, %v2300
    %v2348 = vadd.f32 %v2169, %v2303
    %v2349 = vadd.f32 %v2170, %v2308
    %v2350 = vadd.f32 %v2171, %v2311
    %v2351 = vadd.f32 %v2172, %v2316
    %v2352 = vadd.f32 %v2173, %v2319
    %v2353 = vadd.f32 %v2174, %v2324
    %v2354 = vadd.f32 %v2175, %v2327
    %v2355 = vadd.f32 %v2176, %v2332
    %v2356 = vadd.f32 %v2177, %v2335
    %v2357 = vadd.f32 %v2178, %v2340
    %2358 = vst [vmem:[#allocation2] sm:$0xff] %v2345
    %2359 = vst [vmem:[#allocation2 + $0x8] sm:$0xff] %v2346
    %2360 = vst [vmem:[#allocation2 + $0x10] sm:$0xff] %v2347
    %2361 = vst [vmem:[#allocation2 + $0x18] sm:$0xff] %v2348
    %2362 = vst [vmem:[#allocation2 + $0x20] sm:$0xff] %v2349
    %2363 = vst [vmem:[#allocation2 + $0x28] sm:$0xff] %v2350
    %2364 = vst [vmem:[#allocation2 + $0x30] sm:$0xff] %v2351
    %2365 = vst [vmem:[#allocation2 + $0x38] sm:$0xff] %v2352
    %2366 = vst [vmem:[#allocation2 + $0x40] sm:$0xff] %v2353
    %2367 = vst [vmem:[#allocation2 + $0x48] sm:$0xff] %v2354
    %2368 = vst [vmem:[#allocation2 + $0x50] sm:$0xff] %v2355
    %2369 = vst [vmem:[#allocation2 + $0x58] sm:$0xff] %v2356
    %2370 = vst [vmem:[#allocation2 + $0x60] sm:$0x7] %v2357
    %v2371 = vld [vmem:[%s2] sm:$0x1]
    %v2372 = vld [vmem:[#allocation2] sm:$0xff]
    %v2373 = vld [vmem:[#allocation2 + $0x8] sm:$0x1]
    %v2375 = vlaneseq
    %v2376 = vshrl.u32 %v2375, 7
    %v2377 = vsub.s32 0, %v2376
    %v2378 = vrot.slane %v2371, %v2377
    %v2380 = vadd.f32 %v2372, %v2378
    %v2381 = vadd.f32 %v2373, %v2378
    %v2382 = vmax.f32 %v2380, 0.0
    %v2383 = vmax.f32 %v2381, 0.0
    %v2384 = vpack.c.bf16 %v2383, %v2382
    %v2386 = vunpack.c.l.b16 %v2384
    %v2387 = vunpack.c.h.b16 %v2384
    %v2388 = vpack.c.b16 %v2386, %v2386
    %v2389 = vpack.c.b16 %v2387, %v2387
    %2392 = vst [vmem:[#allocation6] sm:$0xf] %v2388
    %vm2393 = vcmask 1040384
    %vm2394 = vsmask.f32 256
    %vm2395 = vmand %vm2393, %vm2394
    %v2396 = vld [vmem:[#allocation6 + $0x4] sm:$0x1]
    %v2397 = vsel %vm2395, %v2389, %v2396
    %2398 = vst [vmem:[#allocation6 + $0x4] sm:$0x1] %v2397
    %v2399 = vld [vmem:[#allocation2 + $0xb] sm:$0xff]
    %v2400 = vld [vmem:[#allocation2 + $0x13] sm:$0x1]
    %v2401 = vadd.f32 %v2399, %v2378
    %v2402 = vadd.f32 %v2400, %v2378
    %v2403 = vmax.f32 %v2401, 0.0
    %v2404 = vmax.f32 %v2402, 0.0
    %v2405 = vpack.c.bf16 %v2404, %v2403
    %v2407 = vunpack.c.l.b16 %v2405
    %v2408 = vunpack.c.h.b16 %v2405
    %v2409 = vpack.c.b16 %v2407, %v2407
    %v2410 = vpack.c.b16 %v2408, %v2408
    %s2413 = scalar_lea.vmem [#allocation6], 8
    %2414 = vst [vmem:[%s2413] sm:$0xf] %v2409
    %v2415 = vld [vmem:[%s2413 + $0x4] sm:$0x1]
    %v2416 = vsel %vm2395, %v2410, %v2415
    %2417 = vst [vmem:[%s2413 + $0x4] sm:$0x1] %v2416
    %v2418 = vld [vmem:[#allocation2 + $0x16] sm:$0xff]
    %v2419 = vld [vmem:[#allocation2 + $0x1e] sm:$0x1]
    %v2420 = vadd.f32 %v2418, %v2378
    %v2421 = vadd.f32 %v2419, %v2378
    %v2422 = vmax.f32 %v2420, 0.0
    %v2423 = vmax.f32 %v2421, 0.0
    %v2424 = vpack.c.bf16 %v2423, %v2422
    %v2426 = vunpack.c.l.b16 %v2424
    %v2427 = vunpack.c.h.b16 %v2424
    %v2428 = vpack.c.b16 %v2426, %v2426
    %v2429 = vpack.c.b16 %v2427, %v2427
    %s2432 = scalar_lea.vmem [#allocation6], 16
    %2433 = vst [vmem:[%s2432] sm:$0xf] %v2428
    %v2434 = vld [vmem:[%s2432 + $0x4] sm:$0x1]
    %v2435 = vsel %vm2395, %v2429, %v2434
    %2436 = vst [vmem:[%s2432 + $0x4] sm:$0x1] %v2435
    %v2437 = vld [vmem:[#allocation2 + $0x21] sm:$0xff]
    %v2438 = vld [vmem:[#allocation2 + $0x29] sm:$0x1]
    %v2439 = vadd.f32 %v2437, %v2378
    %v2440 = vadd.f32 %v2438, %v2378
    %v2441 = vmax.f32 %v2439, 0.0
    %v2442 = vmax.f32 %v2440, 0.0
    %v2443 = vpack.c.bf16 %v2442, %v2441
    %v2445 = vunpack.c.l.b16 %v2443
    %v2446 = vunpack.c.h.b16 %v2443
    %v2447 = vpack.c.b16 %v2445, %v2445
    %v2448 = vpack.c.b16 %v2446, %v2446
    %s2451 = scalar_lea.vmem [#allocation6], 24
    %2452 = vst [vmem:[%s2451] sm:$0xf] %v2447
    %v2453 = vld [vmem:[%s2451 + $0x4] sm:$0x1]
    %v2454 = vsel %vm2395, %v2448, %v2453
    %2455 = vst [vmem:[%s2451 + $0x4] sm:$0x1] %v2454
    %v2456 = vld [vmem:[#allocation2 + $0x2c] sm:$0xff]
    %v2457 = vld [vmem:[#allocation2 + $0x34] sm:$0x1]
    %v2458 = vadd.f32 %v2456, %v2378
    %v2459 = vadd.f32 %v2457, %v2378
    %v2460 = vmax.f32 %v2458, 0.0
    %v2461 = vmax.f32 %v2459, 0.0
    %v2462 = vpack.c.bf16 %v2461, %v2460
    %v2464 = vunpack.c.l.b16 %v2462
    %v2465 = vunpack.c.h.b16 %v2462
    %v2466 = vpack.c.b16 %v2464, %v2464
    %v2467 = vpack.c.b16 %v2465, %v2465
    %s2470 = scalar_lea.vmem [#allocation6], 32
    %2471 = vst [vmem:[%s2470] sm:$0xf] %v2466
    %v2472 = vld [vmem:[%s2470 + $0x4] sm:$0x1]
    %v2473 = vsel %vm2395, %v2467, %v2472
    %2474 = vst [vmem:[%s2470 + $0x4] sm:$0x1] %v2473
    %v2475 = vld [vmem:[#allocation2 + $0x37] sm:$0xff]
    %v2476 = vld [vmem:[#allocation2 + $0x3f] sm:$0x1]
    %v2477 = vadd.f32 %v2475, %v2378
    %v2478 = vadd.f32 %v2476, %v2378
    %v2479 = vmax.f32 %v2477, 0.0
    %v2480 = vmax.f32 %v2478, 0.0
    %v2481 = vpack.c.bf16 %v2480, %v2479
    %v2483 = vunpack.c.l.b16 %v2481
    %v2484 = vunpack.c.h.b16 %v2481
    %v2485 = vpack.c.b16 %v2483, %v2483
    %v2486 = vpack.c.b16 %v2484, %v2484
    %s2489 = scalar_lea.vmem [#allocation6], 40
    %2490 = vst [vmem:[%s2489] sm:$0xf] %v2485
    %v2491 = vld [vmem:[%s2489 + $0x4] sm:$0x1]
    %v2492 = vsel %vm2395, %v2486, %v2491
    %2493 = vst [vmem:[%s2489 + $0x4] sm:$0x1] %v2492
    %v2494 = vld [vmem:[#allocation2 + $0x42] sm:$0xff]
    %v2495 = vld [vmem:[#allocation2 + $0x4a] sm:$0x1]
    %v2496 = vadd.f32 %v2494, %v2378
    %v2497 = vadd.f32 %v2495, %v2378
    %v2498 = vmax.f32 %v2496, 0.0
    %v2499 = vmax.f32 %v2497, 0.0
    %v2500 = vpack.c.bf16 %v2499, %v2498
    %v2502 = vunpack.c.l.b16 %v2500
    %v2503 = vunpack.c.h.b16 %v2500
    %v2504 = vpack.c.b16 %v2502, %v2502
    %v2505 = vpack.c.b16 %v2503, %v2503
    %s2508 = scalar_lea.vmem [#allocation6], 48
    %2509 = vst [vmem:[%s2508] sm:$0xf] %v2504
    %v2510 = vld [vmem:[%s2508 + $0x4] sm:$0x1]
    %v2511 = vsel %vm2395, %v2505, %v2510
    %2512 = vst [vmem:[%s2508 + $0x4] sm:$0x1] %v2511
    %v2513 = vld [vmem:[#allocation2 + $0x4d] sm:$0xff]
    %v2514 = vld [vmem:[#allocation2 + $0x55] sm:$0x1]
    %v2515 = vadd.f32 %v2513, %v2378
    %v2516 = vadd.f32 %v2514, %v2378
    %v2517 = vmax.f32 %v2515, 0.0
    %v2518 = vmax.f32 %v2516, 0.0
    %v2519 = vpack.c.bf16 %v2518, %v2517
    %v2521 = vunpack.c.l.b16 %v2519
    %v2522 = vunpack.c.h.b16 %v2519
    %v2523 = vpack.c.b16 %v2521, %v2521
    %v2524 = vpack.c.b16 %v2522, %v2522
    %s2527 = scalar_lea.vmem [#allocation6], 56
    %2528 = vst [vmem:[%s2527] sm:$0xf] %v2523
    %v2529 = vld [vmem:[%s2527 + $0x4] sm:$0x1]
    %v2530 = vsel %vm2395, %v2524, %v2529
    %2531 = vst [vmem:[%s2527 + $0x4] sm:$0x1] %v2530
    %v2532 = vld [vmem:[#allocation2 + $0x58] sm:$0xff]
    %v2533 = vld [vmem:[#allocation2 + $0x60] sm:$0x1]
    %v2534 = vadd.f32 %v2532, %v2378
    %v2535 = vadd.f32 %v2533, %v2378
    %v2536 = vmax.f32 %v2534, 0.0
    %v2537 = vmax.f32 %v2535, 0.0
    %v2538 = vpack.c.bf16 %v2537, %v2536
    %v2540 = vunpack.c.l.b16 %v2538
    %v2541 = vunpack.c.h.b16 %v2538
    %v2542 = vpack.c.b16 %v2540, %v2540
    %v2543 = vpack.c.b16 %v2541, %v2541
    %s2546 = scalar_lea.vmem [#allocation6], 64
    %2547 = vst [vmem:[%s2546] sm:$0xf] %v2542
    %v2548 = vld [vmem:[%s2546 + $0x4] sm:$0x1]
    %v2549 = vsel %vm2395, %v2543, %v2548
    %2550 = vst [vmem:[%s2546 + $0x4] sm:$0x1] %v2549
    // Predicated region
    $region18: #{tpu_custom_call.1} parent=1 // pred_check
      _
    $region19: #{tpu_custom_call.1} parent=1 // pred_check_branch
      %2552 = sbr.rel (0) target = $region21
    $region20: #{tpu_custom_call.1} parent=1 // pred_region
      %s2554 = ssub.s32 1152, 1152
      %2555 = vsyncadd [#allocation5], %s2554
      %s2556 = sshll.u32 [#allocation6], 4
      %s2557 = int_to_ptr.vmem [resolvable:$true] %s2556
      %2562 = dma.vmem_to_hbm [thread:$0]  %s2557, 1152, %s3, [#allocation5], 64, 64, 4
    $region21: #{tpu_custom_call.1} parent=1 // pred_fallthru
      _
    // Predicated region
    $region22: #{tpu_custom_call.1} parent=1 // pred_check
      _
    $region23: #{tpu_custom_call.1} parent=1 // pred_check_branch
      %2564 = sbr.rel (0) target = $region25
    $region24: #{tpu_custom_call.1} parent=1 // pred_region
      %2565 = dma.done [#allocation5], 1152
    $region25: #{tpu_custom_call.1} parent=1 // pred_fallthru
      _
    %2566 = vsyncpa [#allocation4], 1
    %2567 = vsyncpa [#allocation5], 1

</llo_original>
